<compile_context>
chip_gen: v7x
topology: tpu7x:2x2x1
jax: 0.10.0
libtpu: 0.0.40
codegen_flags: <defaults>
</compile_context>

<pallas_src>
import functools

import jax
import jax.numpy as jnp
from jax.experimental import pallas as pl
from jax.experimental.pallas import tpu as pltpu


# ----------------------------- in-kernel helpers -----------------------------

def _layernorm(h, g, b):
    mean = jnp.mean(h, axis=-1, keepdims=True)
    var = jnp.mean((h - mean) ** 2, axis=-1, keepdims=True)  # biased, like torch LN
    return (h - mean) * jax.lax.rsqrt(var + 1e-5) * g + b


def _gelu(y):
    # TODO(synk): XLM-R uses exact erf-GELU; tanh-approximate GELU used since erf
    # lowering is not guaranteed in Mosaic (numerically very close).
    c = jnp.float32(0.7978845608028654)  # sqrt(2/pi)
    return 0.5 * y * (1.0 + jnp.tanh(c * (y + 0.044715 * y * y * y)))


# ----------------------------- fused encoder + classifier kernel -----------------------------

def _encoder_cls_kernel(x_emb_ref, bias_ref, eg_ref, eb_ref,
                        wqkv_ref, bqkv_ref, wo_ref, bo_ref,
                        ln1g_ref, ln1b_ref, w1_ref, b1_ref,
                        w2_ref, b2_ref, ln2g_ref, ln2b_ref,
                        clsw_ref, clsb_ref,
                        logits_ref, *, B, S, nH, Dh, L):
    """Single invocation: embedding LN, all L transformer layers, CLS classifier."""
    H = nH * Dh
    scale = jnp.float32(1.0) / jnp.sqrt(jnp.float32(Dh))

    # Additive attention bias broadcast once (outside the layer loop) to the
    # (head*batch) batched layout: row i of the batch corresponds to (h=i//B, b=i%B).
    bias = bias_ref[...]                                              # (B, S)
    bias3 = jnp.broadcast_to(bias, (nH, B, S)).reshape(nH * B, S)[:, None, :]

    # Embedding LayerNorm initializes the residual stream (eval mode -> dropout = id).
    x = _layernorm(x_emb_ref[...], eg_ref[...], eb_ref[...])          # (B*S, H) f32

    for l in range(L):  # L is tiny -> static unroll inside one kernel invocation
        # ---- fused QKV projection: (B*S, H) @ (H, 3H) ----
        qkv = jnp.dot(x.astype(jnp.bfloat16), wqkv_ref[l],
                      preferred_element_type=jnp.float32) + bqkv_ref[l]   # (B*S, 3H)

        # ---- pack heads into one batch: (nH*B, S, Dh) via static lane slices and
        #      leading-dim reshapes/concats only (no transposes / relayout-heavy ops)
        def heads(off):
            return jnp.concatenate(
                [qkv[:, off + h * Dh: off + (h + 1) * Dh].reshape(B, S, Dh)
                 for h in range(nH)], axis=0)
        q, k, v = heads(0), heads(H), heads(2 * H)                    # each (nH*B, S, Dh)

        # ---- batched attention: 2 MXU einsums for ALL batches & heads ----
        s = jnp.einsum('bqd,bkd->bqk',
                       q.astype(jnp.bfloat16), k.astype(jnp.bfloat16),
                       preferred_element_type=jnp.float32) * scale + bias3
        s = s - jnp.max(s, axis=-1, keepdims=True)
        p = jnp.exp(s)
        p = p * pl.reciprocal(jnp.sum(p, axis=-1, keepdims=True), approx=True)
        ctx = jnp.einsum('bqk,bkd->bqd',
                         p.astype(jnp.bfloat16), v.astype(jnp.bfloat16),
                         preferred_element_type=jnp.float32)          # (nH*B, S, Dh)
        # merge heads back to (B*S, H): leading-dim slices + single lane concat
        ctx = jnp.concatenate(
            [ctx[h * B:(h + 1) * B].reshape(B * S, Dh) for h in range(nH)], axis=1)

        # ---- output projection + residual + LN ----
        attn_out = jnp.dot(ctx.astype(jnp.bfloat16), wo_ref[l],
                           preferred_element_type=jnp.float32) + bo_ref[l]
        x = _layernorm(attn_out + x, ln1g_ref[l], ln1b_ref[l])

        # ---- FFN (GELU) + residual + LN ----
        h1 = jnp.dot(x.astype(jnp.bfloat16), w1_ref[l],
                     preferred_element_type=jnp.float32) + b1_ref[l]
        h1 = _gelu(h1)
        h2 = jnp.dot(h1.astype(jnp.bfloat16), w2_ref[l],
                     preferred_element_type=jnp.float32) + b2_ref[l]
        x = _layernorm(h2 + x, ln2g_ref[l], ln2b_ref[l])

    # ---- classifier epilogue fused in-kernel: only CLS logits leave VMEM ----
    cls = x.reshape(B, S, H)[:, 0, :]                                 # (B, H)
    logits_ref[...] = jnp.dot(cls, clsw_ref[...],
                              preferred_element_type=jnp.float32) + clsb_ref[...]


def encoder_classify(x_emb, bias, params, cfg):
    BS, H = x_emb.shape
    B, S = bias.shape
    L, nH = cfg["layers"], cfg["heads"]
    Dh = H // nH

    kernel = functools.partial(_encoder_cls_kernel, B=B, S=S, nH=nH, Dh=Dh, L=L)

    # Gridless call: every array is a full-extent VMEM block (fits easily at toy sizes).
    return pl.pallas_call(
        kernel,
        out_shape=jax.ShapeDtypeStruct((B, cfg["num_classes"]), jnp.float32),
        compiler_params=pltpu.CompilerParams(vmem_limit_bytes=32 << 20),
    )(x_emb, bias,
      params["emb_ln_g"], params["emb_ln_b"],
      params["wqkv"], params["bqkv"],
      params["wo"], params["bo"],
      params["ln1_g"], params["ln1_b"],
      params["w1"], params["b1"],
      params["w2"], params["b2"],
      params["ln2_g"], params["ln2_b"],
      params["cls_w"], params["cls_b"])


# ----------------------------- model -----------------------------

CFG = dict(vocab=128, hidden=32, heads=2, inter=64, layers=2,
           max_pos=64, pad_id=1, num_classes=2)


def init_params(key, cfg):
    H, I, L = cfg["hidden"], cfg["inter"], cfg["layers"]
    std = 0.02

    def normal(k, shape, dtype=jnp.float32):
        return (std * jax.random.normal(k, shape)).astype(dtype)

    keys = jax.random.split(key, 8)
    return {
        "word_emb": normal(keys[0], (cfg["vocab"], H)),
        "pos_emb": normal(keys[1], (cfg["max_pos"], H)),
        "type_emb": normal(keys[2], (1, H)),
        "emb_ln_g": jnp.ones((1, H), jnp.float32),
        "emb_ln_b": jnp.zeros((1, H), jnp.float32),
        "cls_w": normal(keys[3], (H, cfg["num_classes"])),
        "cls_b": jnp.zeros((1, cfg["num_classes"]), jnp.float32),
        # fused Q|K|V projection weight, stacked over layers, bf16 for the MXU
        "wqkv": normal(keys[4], (L, H, 3 * H), jnp.bfloat16),
        "bqkv": jnp.zeros((L, 1, 3 * H), jnp.float32),
        "wo": normal(keys[5], (L, H, H), jnp.bfloat16),
        "bo": jnp.zeros((L, 1, H), jnp.float32),
        "ln1_g": jnp.ones((L, 1, H), jnp.float32),
        "ln1_b": jnp.zeros((L, 1, H), jnp.float32),
        "w1": normal(keys[6], (L, H, I), jnp.bfloat16),
        "b1": jnp.zeros((L, 1, I), jnp.float32),
        "w2": normal(keys[7], (L, I, H), jnp.bfloat16),
        "b2": jnp.zeros((L, 1, H), jnp.float32),
        "ln2_g": jnp.ones((L, 1, H), jnp.float32),
        "ln2_b": jnp.zeros((L, 1, H), jnp.float32),
    }


def forward(params, input_ids, attention_mask, cfg):
    B, S = input_ids.shape
    H = cfg["hidden"]
    pad = cfg["pad_id"]

    # --- embeddings (gather is glue in plain JAX; eval mode -> dropout = identity)
    mask_i = (input_ids != pad).astype(jnp.int32)
    position_ids = jnp.cumsum(mask_i, axis=1) * mask_i + pad  # RoBERTa-style positions
    emb = (params["word_emb"][input_ids]
           + params["pos_emb"][position_ids]
           + params["type_emb"][0])
    x_emb = emb.reshape(B * S, H).astype(jnp.float32)

    # additive attention mask bias: 0 for real tokens, -1e9 for padding
    bias = (1.0 - attention_mask.astype(jnp.float32)) * -1e9    # (B, S)

    # fused encoder stack + CLS classifier -> (B, num_classes)
    logits = encoder_classify(x_emb, bias, params, cfg)
    return logits


if __name__ == "__main__":
    cfg = CFG
    B, S = 2, 8
    key = jax.random.PRNGKey(0)
    k_ids, k_params = jax.random.split(key)

    input_ids = jax.random.randint(k_ids, (B, S), 2, cfg["vocab"], dtype=jnp.int32)
    input_ids = input_ids.at[:, 0].set(0)                     # <s> (CLS) token
    input_ids = input_ids.at[1, S - 2:].set(cfg["pad_id"])    # pad tail of 2nd sequence
    attention_mask = (input_ids != cfg["pad_id"]).astype(jnp.int32)

    params = init_params(k_params, cfg)

    fwd = jax.jit(lambda p, ids, m: forward(p, ids, m, cfg))
    logits = fwd(params, input_ids, attention_mask)
    jax.block_until_ready(logits)
    assert logits.shape == (B, cfg["num_classes"])
    assert logits.dtype == jnp.float32
    print("KERNEL_OK")
</pallas_src>

<mosaic_0001>
module attributes {stable_mosaic.version = 11 : i64} {
  func.func @_encoder_cls_kernel(%arg0: memref<16x32xf32, #tpu.memory_space<vmem>>, %arg1: memref<2x8xf32, #tpu.memory_space<vmem>>, %arg2: memref<1x32xf32, #tpu.memory_space<vmem>>, %arg3: memref<1x32xf32, #tpu.memory_space<vmem>>, %arg4: memref<2x32x96xbf16, #tpu.memory_space<vmem>>, %arg5: memref<2x1x96xf32, #tpu.memory_space<vmem>>, %arg6: memref<2x32x32xbf16, #tpu.memory_space<vmem>>, %arg7: memref<2x1x32xf32, #tpu.memory_space<vmem>>, %arg8: memref<2x1x32xf32, #tpu.memory_space<vmem>>, %arg9: memref<2x1x32xf32, #tpu.memory_space<vmem>>, %arg10: memref<2x32x64xbf16, #tpu.memory_space<vmem>>, %arg11: memref<2x1x64xf32, #tpu.memory_space<vmem>>, %arg12: memref<2x64x32xbf16, #tpu.memory_space<vmem>>, %arg13: memref<2x1x32xf32, #tpu.memory_space<vmem>>, %arg14: memref<2x1x32xf32, #tpu.memory_space<vmem>>, %arg15: memref<2x1x32xf32, #tpu.memory_space<vmem>>, %arg16: memref<32x2xf32, #tpu.memory_space<vmem>>, %arg17: memref<1x2xf32, #tpu.memory_space<vmem>>, %arg18: memref<2x2xf32, #tpu.memory_space<vmem>>) attributes {dimension_semantics = [], scalar_prefetch = 0 : i64, scratch_operands = 0 : i64, tpu.core_type = #tpu.core_type<tc>} {
    %cst = arith.constant 1.600000e+01 : f32
    %0 = math.sqrt %cst : f32
    %cst_0 = arith.constant 1.000000e+00 : f32
    %1 = arith.divf %cst_0, %0 : f32
    %c0 = arith.constant 0 : index
    %c0_1 = arith.constant 0 : index
    %2 = vector.load %arg1[%c0, %c0_1] : memref<2x8xf32, #tpu.memory_space<vmem>>, vector<2x8xf32>
    %3 = vector.shape_cast %2 : vector<2x8xf32> to vector<1x2x8xf32>
    %4 = vector.broadcast %3 : vector<1x2x8xf32> to vector<2x2x8xf32>
    %5 = vector.shape_cast %4 : vector<2x2x8xf32> to vector<4x8xf32>
    %6 = vector.shape_cast %5 : vector<4x8xf32> to vector<4x1x8xf32>
    %c0_2 = arith.constant 0 : index
    %c0_3 = arith.constant 0 : index
    %7 = vector.load %arg0[%c0_2, %c0_3] : memref<16x32xf32, #tpu.memory_space<vmem>>, vector<16x32xf32>
    %c0_4 = arith.constant 0 : index
    %c0_5 = arith.constant 0 : index
    %8 = vector.load %arg2[%c0_4, %c0_5] : memref<1x32xf32, #tpu.memory_space<vmem>>, vector<1x32xf32>
    %c0_6 = arith.constant 0 : index
    %c0_7 = arith.constant 0 : index
    %9 = vector.load %arg3[%c0_6, %c0_7] : memref<1x32xf32, #tpu.memory_space<vmem>>, vector<1x32xf32>
    %cst_8 = arith.constant dense<0.000000e+00> : vector<16xf32>
    %10 = vector.multi_reduction <add>, %7, %cst_8 [1] : vector<16x32xf32> to vector<16xf32>
    %11 = vector.shape_cast %10 : vector<16xf32> to vector<16x1xf32>
    %cst_9 = arith.constant 3.200000e+01 : f32
    %12 = vector.broadcast %cst_9 : f32 to vector<16x1xf32>
    %13 = arith.divf %11, %12 : vector<16x1xf32>
    %14 = vector.broadcast %13 : vector<16x1xf32> to vector<16x32xf32>
    %15 = arith.subf %7, %14 : vector<16x32xf32>
    %16 = arith.mulf %15, %15 : vector<16x32xf32>
    %cst_10 = arith.constant dense<0.000000e+00> : vector<16xf32>
    %17 = vector.multi_reduction <add>, %16, %cst_10 [1] : vector<16x32xf32> to vector<16xf32>
    %18 = vector.shape_cast %17 : vector<16xf32> to vector<16x1xf32>
    %cst_11 = arith.constant 3.200000e+01 : f32
    %19 = vector.broadcast %cst_11 : f32 to vector<16x1xf32>
    %20 = arith.divf %18, %19 : vector<16x1xf32>
    %21 = vector.broadcast %13 : vector<16x1xf32> to vector<16x32xf32>
    %22 = arith.subf %7, %21 : vector<16x32xf32>
    %cst_12 = arith.constant 9.99999974E-6 : f32
    %23 = vector.broadcast %cst_12 : f32 to vector<16x1xf32>
    %24 = arith.addf %20, %23 : vector<16x1xf32>
    %25 = math.rsqrt %24 : vector<16x1xf32>
    %26 = vector.broadcast %25 : vector<16x1xf32> to vector<16x32xf32>
    %27 = arith.mulf %22, %26 : vector<16x32xf32>
    %28 = vector.broadcast %8 : vector<1x32xf32> to vector<16x32xf32>
    %29 = arith.mulf %27, %28 : vector<16x32xf32>
    %30 = vector.broadcast %9 : vector<1x32xf32> to vector<16x32xf32>
    %31 = arith.addf %29, %30 : vector<16x32xf32>
    %32 = arith.truncf %31 : vector<16x32xf32> to vector<16x32xbf16>
    %c0_13 = arith.constant 0 : index
    %c0_14 = arith.constant 0 : index
    %c0_15 = arith.constant 0 : index
    %33 = vector.load %arg4[%c0_13, %c0_14, %c0_15] : memref<2x32x96xbf16, #tpu.memory_space<vmem>>, vector<1x32x96xbf16>
    %34 = vector.shape_cast %33 : vector<1x32x96xbf16> to vector<32x96xbf16>
    %cst_16 = arith.constant dense<0.000000e+00> : vector<16x96xf32>
    %35 = tpu.matmul %32, %34, %cst_16 {dimension_numbers = #tpu.dot_dimension_numbers<[1], [0], [0], [1], [0, 0, 1, 1], [], []>} : vector<16x32xbf16>, vector<32x96xbf16>, vector<16x96xf32> -> vector<16x96xf32>
    %c0_17 = arith.constant 0 : index
    %c0_18 = arith.constant 0 : index
    %c0_19 = arith.constant 0 : index
    %36 = vector.load %arg5[%c0_17, %c0_18, %c0_19] : memref<2x1x96xf32, #tpu.memory_space<vmem>>, vector<1x1x96xf32>
    %37 = vector.shape_cast %36 : vector<1x1x96xf32> to vector<1x96xf32>
    %38 = vector.broadcast %37 : vector<1x96xf32> to vector<16x96xf32>
    %39 = arith.addf %35, %38 : vector<16x96xf32>
    %40 = vector.extract_strided_slice %39 {offsets = [0, 0], sizes = [16, 16], strides = [1, 1]} : vector<16x96xf32> to vector<16x16xf32>
    %41 = vector.shape_cast %40 : vector<16x16xf32> to vector<2x8x16xf32>
    %42 = vector.extract_strided_slice %39 {offsets = [0, 16], sizes = [16, 16], strides = [1, 1]} : vector<16x96xf32> to vector<16x16xf32>
    %43 = vector.shape_cast %42 : vector<16x16xf32> to vector<2x8x16xf32>
    %44 = tpu.concatenate %41, %43 in 0 : vector<2x8x16xf32>, vector<2x8x16xf32> -> vector<4x8x16xf32>
    %45 = vector.extract_strided_slice %39 {offsets = [0, 32], sizes = [16, 16], strides = [1, 1]} : vector<16x96xf32> to vector<16x16xf32>
    %46 = vector.shape_cast %45 : vector<16x16xf32> to vector<2x8x16xf32>
    %47 = vector.extract_strided_slice %39 {offsets = [0, 48], sizes = [16, 16], strides = [1, 1]} : vector<16x96xf32> to vector<16x16xf32>
    %48 = vector.shape_cast %47 : vector<16x16xf32> to vector<2x8x16xf32>
    %49 = tpu.concatenate %46, %48 in 0 : vector<2x8x16xf32>, vector<2x8x16xf32> -> vector<4x8x16xf32>
    %50 = vector.extract_strided_slice %39 {offsets = [0, 64], sizes = [16, 16], strides = [1, 1]} : vector<16x96xf32> to vector<16x16xf32>
    %51 = vector.shape_cast %50 : vector<16x16xf32> to vector<2x8x16xf32>
    %52 = vector.extract_strided_slice %39 {offsets = [0, 80], sizes = [16, 16], strides = [1, 1]} : vector<16x96xf32> to vector<16x16xf32>
    %53 = vector.shape_cast %52 : vector<16x16xf32> to vector<2x8x16xf32>
    %54 = tpu.concatenate %51, %53 in 0 : vector<2x8x16xf32>, vector<2x8x16xf32> -> vector<4x8x16xf32>
    %55 = arith.truncf %44 : vector<4x8x16xf32> to vector<4x8x16xbf16>
    %56 = arith.truncf %49 : vector<4x8x16xf32> to vector<4x8x16xbf16>
    "tpu.trace_start"() <{level = 10 : i32, message = "bqd,bkd->bqk"}> : () -> ()
    %cst_20 = arith.constant dense<0.000000e+00> : vector<4x8x8xf32>
    %57 = tpu.matmul %55, %56, %cst_20 {dimension_numbers = #tpu.dot_dimension_numbers<[2], [2], [1], [1], [0, 0, 0, 1, 1, 1], [0], [0]>} : vector<4x8x16xbf16>, vector<4x8x16xbf16>, vector<4x8x8xf32> -> vector<4x8x8xf32>
    "tpu.trace_stop"() : () -> ()
    %58 = vector.broadcast %1 : f32 to vector<4x8x8xf32>
    %59 = arith.mulf %57, %58 : vector<4x8x8xf32>
    %60 = vector.broadcast %6 : vector<4x1x8xf32> to vector<4x8x8xf32>
    %61 = arith.addf %59, %60 : vector<4x8x8xf32>
    %cst_21 = arith.constant dense<0xFF800000> : vector<4x8xf32>
    %62 = vector.multi_reduction <maximumf>, %61, %cst_21 [2] : vector<4x8x8xf32> to vector<4x8xf32>
    %63 = vector.shape_cast %62 : vector<4x8xf32> to vector<4x8x1xf32>
    %64 = vector.broadcast %63 : vector<4x8x1xf32> to vector<4x8x8xf32>
    %65 = arith.subf %61, %64 : vector<4x8x8xf32>
    %66 = math.exp %65 : vector<4x8x8xf32>
    %cst_22 = arith.constant dense<0.000000e+00> : vector<4x8xf32>
    %67 = vector.multi_reduction <add>, %66, %cst_22 [2] : vector<4x8x8xf32> to vector<4x8xf32>
    %68 = vector.shape_cast %67 : vector<4x8xf32> to vector<4x8x1xf32>
    %69 = tpu.reciprocal %68 {approx = true} : vector<4x8x1xf32> -> vector<4x8x1xf32>
    %70 = vector.broadcast %69 : vector<4x8x1xf32> to vector<4x8x8xf32>
    %71 = arith.mulf %66, %70 : vector<4x8x8xf32>
    %72 = arith.truncf %71 : vector<4x8x8xf32> to vector<4x8x8xbf16>
    %73 = arith.truncf %54 : vector<4x8x16xf32> to vector<4x8x16xbf16>
    "tpu.trace_start"() <{level = 10 : i32, message = "bqk,bkd->bqd"}> : () -> ()
    %cst_23 = arith.constant dense<0.000000e+00> : vector<4x8x16xf32>
    %74 = tpu.matmul %72, %73, %cst_23 {dimension_numbers = #tpu.dot_dimension_numbers<[2], [1], [1], [2], [0, 0, 0, 1, 1, 2], [0], [0]>} : vector<4x8x8xbf16>, vector<4x8x16xbf16>, vector<4x8x16xf32> -> vector<4x8x16xf32>
    "tpu.trace_stop"() : () -> ()
    %75 = vector.extract_strided_slice %74 {offsets = [0, 0, 0], sizes = [2, 8, 16], strides = [1, 1, 1]} : vector<4x8x16xf32> to vector<2x8x16xf32>
    %76 = vector.shape_cast %75 : vector<2x8x16xf32> to vector<16x16xf32>
    %77 = vector.extract_strided_slice %74 {offsets = [2, 0, 0], sizes = [2, 8, 16], strides = [1, 1, 1]} : vector<4x8x16xf32> to vector<2x8x16xf32>
    %78 = vector.shape_cast %77 : vector<2x8x16xf32> to vector<16x16xf32>
    %79 = tpu.concatenate %76, %78 in 1 : vector<16x16xf32>, vector<16x16xf32> -> vector<16x32xf32>
    %80 = arith.truncf %79 : vector<16x32xf32> to vector<16x32xbf16>
    %c0_24 = arith.constant 0 : index
    %c0_25 = arith.constant 0 : index
    %c0_26 = arith.constant 0 : index
    %81 = vector.load %arg6[%c0_24, %c0_25, %c0_26] : memref<2x32x32xbf16, #tpu.memory_space<vmem>>, vector<1x32x32xbf16>
    %82 = vector.shape_cast %81 : vector<1x32x32xbf16> to vector<32x32xbf16>
    %cst_27 = arith.constant dense<0.000000e+00> : vector<16x32xf32>
    %83 = tpu.matmul %80, %82, %cst_27 {dimension_numbers = #tpu.dot_dimension_numbers<[1], [0], [0], [1], [0, 0, 1, 1], [], []>} : vector<16x32xbf16>, vector<32x32xbf16>, vector<16x32xf32> -> vector<16x32xf32>
    %c0_28 = arith.constant 0 : index
    %c0_29 = arith.constant 0 : index
    %c0_30 = arith.constant 0 : index
    %84 = vector.load %arg7[%c0_28, %c0_29, %c0_30] : memref<2x1x32xf32, #tpu.memory_space<vmem>>, vector<1x1x32xf32>
    %85 = vector.shape_cast %84 : vector<1x1x32xf32> to vector<1x32xf32>
    %86 = vector.broadcast %85 : vector<1x32xf32> to vector<16x32xf32>
    %87 = arith.addf %83, %86 : vector<16x32xf32>
    %88 = arith.addf %87, %31 : vector<16x32xf32>
    %c0_31 = arith.constant 0 : index
    %c0_32 = arith.constant 0 : index
    %c0_33 = arith.constant 0 : index
    %89 = vector.load %arg8[%c0_31, %c0_32, %c0_33] : memref<2x1x32xf32, #tpu.memory_space<vmem>>, vector<1x1x32xf32>
    %90 = vector.shape_cast %89 : vector<1x1x32xf32> to vector<1x32xf32>
    %c0_34 = arith.constant 0 : index
    %c0_35 = arith.constant 0 : index
    %c0_36 = arith.constant 0 : index
    %91 = vector.load %arg9[%c0_34, %c0_35, %c0_36] : memref<2x1x32xf32, #tpu.memory_space<vmem>>, vector<1x1x32xf32>
    %92 = vector.shape_cast %91 : vector<1x1x32xf32> to vector<1x32xf32>
    %cst_37 = arith.constant dense<0.000000e+00> : vector<16xf32>
    %93 = vector.multi_reduction <add>, %88, %cst_37 [1] : vector<16x32xf32> to vector<16xf32>
    %94 = vector.shape_cast %93 : vector<16xf32> to vector<16x1xf32>
    %cst_38 = arith.constant 3.200000e+01 : f32
    %95 = vector.broadcast %cst_38 : f32 to vector<16x1xf32>
    %96 = arith.divf %94, %95 : vector<16x1xf32>
    %97 = vector.broadcast %96 : vector<16x1xf32> to vector<16x32xf32>
    %98 = arith.subf %88, %97 : vector<16x32xf32>
    %99 = arith.mulf %98, %98 : vector<16x32xf32>
    %cst_39 = arith.constant dense<0.000000e+00> : vector<16xf32>
    %100 = vector.multi_reduction <add>, %99, %cst_39 [1] : vector<16x32xf32> to vector<16xf32>
    %101 = vector.shape_cast %100 : vector<16xf32> to vector<16x1xf32>
    %cst_40 = arith.constant 3.200000e+01 : f32
    %102 = vector.broadcast %cst_40 : f32 to vector<16x1xf32>
    %103 = arith.divf %101, %102 : vector<16x1xf32>
    %104 = vector.broadcast %96 : vector<16x1xf32> to vector<16x32xf32>
    %105 = arith.subf %88, %104 : vector<16x32xf32>
    %cst_41 = arith.constant 9.99999974E-6 : f32
    %106 = vector.broadcast %cst_41 : f32 to vector<16x1xf32>
    %107 = arith.addf %103, %106 : vector<16x1xf32>
    %108 = math.rsqrt %107 : vector<16x1xf32>
    %109 = vector.broadcast %108 : vector<16x1xf32> to vector<16x32xf32>
    %110 = arith.mulf %105, %109 : vector<16x32xf32>
    %111 = vector.broadcast %90 : vector<1x32xf32> to vector<16x32xf32>
    %112 = arith.mulf %110, %111 : vector<16x32xf32>
    %113 = vector.broadcast %92 : vector<1x32xf32> to vector<16x32xf32>
    %114 = arith.addf %112, %113 : vector<16x32xf32>
    %115 = arith.truncf %114 : vector<16x32xf32> to vector<16x32xbf16>
    %c0_42 = arith.constant 0 : index
    %c0_43 = arith.constant 0 : index
    %c0_44 = arith.constant 0 : index
    %116 = vector.load %arg10[%c0_42, %c0_43, %c0_44] : memref<2x32x64xbf16, #tpu.memory_space<vmem>>, vector<1x32x64xbf16>
    %117 = vector.shape_cast %116 : vector<1x32x64xbf16> to vector<32x64xbf16>
    %cst_45 = arith.constant dense<0.000000e+00> : vector<16x64xf32>
    %118 = tpu.matmul %115, %117, %cst_45 {dimension_numbers = #tpu.dot_dimension_numbers<[1], [0], [0], [1], [0, 0, 1, 1], [], []>} : vector<16x32xbf16>, vector<32x64xbf16>, vector<16x64xf32> -> vector<16x64xf32>
    %c0_46 = arith.constant 0 : index
    %c0_47 = arith.constant 0 : index
    %c0_48 = arith.constant 0 : index
    %119 = vector.load %arg11[%c0_46, %c0_47, %c0_48] : memref<2x1x64xf32, #tpu.memory_space<vmem>>, vector<1x1x64xf32>
    %120 = vector.shape_cast %119 : vector<1x1x64xf32> to vector<1x64xf32>
    %121 = vector.broadcast %120 : vector<1x64xf32> to vector<16x64xf32>
    %122 = arith.addf %118, %121 : vector<16x64xf32>
    %cst_49 = arith.constant 5.000000e-01 : f32
    %123 = vector.broadcast %cst_49 : f32 to vector<16x64xf32>
    %124 = arith.mulf %123, %122 : vector<16x64xf32>
    %cst_50 = arith.constant 4.471500e-02 : f32
    %125 = vector.broadcast %cst_50 : f32 to vector<16x64xf32>
    %126 = arith.mulf %125, %122 : vector<16x64xf32>
    %127 = arith.mulf %126, %122 : vector<16x64xf32>
    %128 = arith.mulf %127, %122 : vector<16x64xf32>
    %129 = arith.addf %122, %128 : vector<16x64xf32>
    %cst_51 = arith.constant 0.797884583 : f32
    %130 = vector.broadcast %cst_51 : f32 to vector<16x64xf32>
    %131 = arith.mulf %130, %129 : vector<16x64xf32>
    %132 = math.tanh %131 : vector<16x64xf32>
    %cst_52 = arith.constant 1.000000e+00 : f32
    %133 = vector.broadcast %cst_52 : f32 to vector<16x64xf32>
    %134 = arith.addf %133, %132 : vector<16x64xf32>
    %135 = arith.mulf %124, %134 : vector<16x64xf32>
    %136 = arith.truncf %135 : vector<16x64xf32> to vector<16x64xbf16>
    %c0_53 = arith.constant 0 : index
    %c0_54 = arith.constant 0 : index
    %c0_55 = arith.constant 0 : index
    %137 = vector.load %arg12[%c0_53, %c0_54, %c0_55] : memref<2x64x32xbf16, #tpu.memory_space<vmem>>, vector<1x64x32xbf16>
    %138 = vector.shape_cast %137 : vector<1x64x32xbf16> to vector<64x32xbf16>
    %cst_56 = arith.constant dense<0.000000e+00> : vector<16x32xf32>
    %139 = tpu.matmul %136, %138, %cst_56 {dimension_numbers = #tpu.dot_dimension_numbers<[1], [0], [0], [1], [0, 0, 1, 1], [], []>} : vector<16x64xbf16>, vector<64x32xbf16>, vector<16x32xf32> -> vector<16x32xf32>
    %c0_57 = arith.constant 0 : index
    %c0_58 = arith.constant 0 : index
    %c0_59 = arith.constant 0 : index
    %140 = vector.load %arg13[%c0_57, %c0_58, %c0_59] : memref<2x1x32xf32, #tpu.memory_space<vmem>>, vector<1x1x32xf32>
    %141 = vector.shape_cast %140 : vector<1x1x32xf32> to vector<1x32xf32>
    %142 = vector.broadcast %141 : vector<1x32xf32> to vector<16x32xf32>
    %143 = arith.addf %139, %142 : vector<16x32xf32>
    %144 = arith.addf %143, %114 : vector<16x32xf32>
    %c0_60 = arith.constant 0 : index
    %c0_61 = arith.constant 0 : index
    %c0_62 = arith.constant 0 : index
    %145 = vector.load %arg14[%c0_60, %c0_61, %c0_62] : memref<2x1x32xf32, #tpu.memory_space<vmem>>, vector<1x1x32xf32>
    %146 = vector.shape_cast %145 : vector<1x1x32xf32> to vector<1x32xf32>
    %c0_63 = arith.constant 0 : index
    %c0_64 = arith.constant 0 : index
    %c0_65 = arith.constant 0 : index
    %147 = vector.load %arg15[%c0_63, %c0_64, %c0_65] : memref<2x1x32xf32, #tpu.memory_space<vmem>>, vector<1x1x32xf32>
    %148 = vector.shape_cast %147 : vector<1x1x32xf32> to vector<1x32xf32>
    %cst_66 = arith.constant dense<0.000000e+00> : vector<16xf32>
    %149 = vector.multi_reduction <add>, %144, %cst_66 [1] : vector<16x32xf32> to vector<16xf32>
    %150 = vector.shape_cast %149 : vector<16xf32> to vector<16x1xf32>
    %cst_67 = arith.constant 3.200000e+01 : f32
    %151 = vector.broadcast %cst_67 : f32 to vector<16x1xf32>
    %152 = arith.divf %150, %151 : vector<16x1xf32>
    %153 = vector.broadcast %152 : vector<16x1xf32> to vector<16x32xf32>
    %154 = arith.subf %144, %153 : vector<16x32xf32>
    %155 = arith.mulf %154, %154 : vector<16x32xf32>
    %cst_68 = arith.constant dense<0.000000e+00> : vector<16xf32>
    %156 = vector.multi_reduction <add>, %155, %cst_68 [1] : vector<16x32xf32> to vector<16xf32>
    %157 = vector.shape_cast %156 : vector<16xf32> to vector<16x1xf32>
    %cst_69 = arith.constant 3.200000e+01 : f32
    %158 = vector.broadcast %cst_69 : f32 to vector<16x1xf32>
    %159 = arith.divf %157, %158 : vector<16x1xf32>
    %160 = vector.broadcast %152 : vector<16x1xf32> to vector<16x32xf32>
    %161 = arith.subf %144, %160 : vector<16x32xf32>
    %cst_70 = arith.constant 9.99999974E-6 : f32
    %162 = vector.broadcast %cst_70 : f32 to vector<16x1xf32>
    %163 = arith.addf %159, %162 : vector<16x1xf32>
    %164 = math.rsqrt %163 : vector<16x1xf32>
    %165 = vector.broadcast %164 : vector<16x1xf32> to vector<16x32xf32>
    %166 = arith.mulf %161, %165 : vector<16x32xf32>
    %167 = vector.broadcast %146 : vector<1x32xf32> to vector<16x32xf32>
    %168 = arith.mulf %166, %167 : vector<16x32xf32>
    %169 = vector.broadcast %148 : vector<1x32xf32> to vector<16x32xf32>
    %170 = arith.addf %168, %169 : vector<16x32xf32>
    %171 = arith.truncf %170 : vector<16x32xf32> to vector<16x32xbf16>
    %c1 = arith.constant 1 : index
    %c0_71 = arith.constant 0 : index
    %c0_72 = arith.constant 0 : index
    %172 = vector.load %arg4[%c1, %c0_71, %c0_72] : memref<2x32x96xbf16, #tpu.memory_space<vmem>>, vector<1x32x96xbf16>
    %173 = vector.shape_cast %172 : vector<1x32x96xbf16> to vector<32x96xbf16>
    %cst_73 = arith.constant dense<0.000000e+00> : vector<16x96xf32>
    %174 = tpu.matmul %171, %173, %cst_73 {dimension_numbers = #tpu.dot_dimension_numbers<[1], [0], [0], [1], [0, 0, 1, 1], [], []>} : vector<16x32xbf16>, vector<32x96xbf16>, vector<16x96xf32> -> vector<16x96xf32>
    %c1_74 = arith.constant 1 : index
    %c0_75 = arith.constant 0 : index
    %c0_76 = arith.constant 0 : index
    %175 = vector.load %arg5[%c1_74, %c0_75, %c0_76] : memref<2x1x96xf32, #tpu.memory_space<vmem>>, vector<1x1x96xf32>
    %176 = vector.shape_cast %175 : vector<1x1x96xf32> to vector<1x96xf32>
    %177 = vector.broadcast %176 : vector<1x96xf32> to vector<16x96xf32>
    %178 = arith.addf %174, %177 : vector<16x96xf32>
    %179 = vector.extract_strided_slice %178 {offsets = [0, 0], sizes = [16, 16], strides = [1, 1]} : vector<16x96xf32> to vector<16x16xf32>
    %180 = vector.shape_cast %179 : vector<16x16xf32> to vector<2x8x16xf32>
    %181 = vector.extract_strided_slice %178 {offsets = [0, 16], sizes = [16, 16], strides = [1, 1]} : vector<16x96xf32> to vector<16x16xf32>
    %182 = vector.shape_cast %181 : vector<16x16xf32> to vector<2x8x16xf32>
    %183 = tpu.concatenate %180, %182 in 0 : vector<2x8x16xf32>, vector<2x8x16xf32> -> vector<4x8x16xf32>
    %184 = vector.extract_strided_slice %178 {offsets = [0, 32], sizes = [16, 16], strides = [1, 1]} : vector<16x96xf32> to vector<16x16xf32>
    %185 = vector.shape_cast %184 : vector<16x16xf32> to vector<2x8x16xf32>
    %186 = vector.extract_strided_slice %178 {offsets = [0, 48], sizes = [16, 16], strides = [1, 1]} : vector<16x96xf32> to vector<16x16xf32>
    %187 = vector.shape_cast %186 : vector<16x16xf32> to vector<2x8x16xf32>
    %188 = tpu.concatenate %185, %187 in 0 : vector<2x8x16xf32>, vector<2x8x16xf32> -> vector<4x8x16xf32>
    %189 = vector.extract_strided_slice %178 {offsets = [0, 64], sizes = [16, 16], strides = [1, 1]} : vector<16x96xf32> to vector<16x16xf32>
    %190 = vector.shape_cast %189 : vector<16x16xf32> to vector<2x8x16xf32>
    %191 = vector.extract_strided_slice %178 {offsets = [0, 80], sizes = [16, 16], strides = [1, 1]} : vector<16x96xf32> to vector<16x16xf32>
    %192 = vector.shape_cast %191 : vector<16x16xf32> to vector<2x8x16xf32>
    %193 = tpu.concatenate %190, %192 in 0 : vector<2x8x16xf32>, vector<2x8x16xf32> -> vector<4x8x16xf32>
    %194 = arith.truncf %183 : vector<4x8x16xf32> to vector<4x8x16xbf16>
    %195 = arith.truncf %188 : vector<4x8x16xf32> to vector<4x8x16xbf16>
    "tpu.trace_start"() <{level = 10 : i32, message = "bqd,bkd->bqk"}> : () -> ()
    %cst_77 = arith.constant dense<0.000000e+00> : vector<4x8x8xf32>
    %196 = tpu.matmul %194, %195, %cst_77 {dimension_numbers = #tpu.dot_dimension_numbers<[2], [2], [1], [1], [0, 0, 0, 1, 1, 1], [0], [0]>} : vector<4x8x16xbf16>, vector<4x8x16xbf16>, vector<4x8x8xf32> -> vector<4x8x8xf32>
    "tpu.trace_stop"() : () -> ()
    %197 = vector.broadcast %1 : f32 to vector<4x8x8xf32>
    %198 = arith.mulf %196, %197 : vector<4x8x8xf32>
    %199 = vector.broadcast %6 : vector<4x1x8xf32> to vector<4x8x8xf32>
    %200 = arith.addf %198, %199 : vector<4x8x8xf32>
    %cst_78 = arith.constant dense<0xFF800000> : vector<4x8xf32>
    %201 = vector.multi_reduction <maximumf>, %200, %cst_78 [2] : vector<4x8x8xf32> to vector<4x8xf32>
    %202 = vector.shape_cast %201 : vector<4x8xf32> to vector<4x8x1xf32>
    %203 = vector.broadcast %202 : vector<4x8x1xf32> to vector<4x8x8xf32>
    %204 = arith.subf %200, %203 : vector<4x8x8xf32>
    %205 = math.exp %204 : vector<4x8x8xf32>
    %cst_79 = arith.constant dense<0.000000e+00> : vector<4x8xf32>
    %206 = vector.multi_reduction <add>, %205, %cst_79 [2] : vector<4x8x8xf32> to vector<4x8xf32>
    %207 = vector.shape_cast %206 : vector<4x8xf32> to vector<4x8x1xf32>
    %208 = tpu.reciprocal %207 {approx = true} : vector<4x8x1xf32> -> vector<4x8x1xf32>
    %209 = vector.broadcast %208 : vector<4x8x1xf32> to vector<4x8x8xf32>
    %210 = arith.mulf %205, %209 : vector<4x8x8xf32>
    %211 = arith.truncf %210 : vector<4x8x8xf32> to vector<4x8x8xbf16>
    %212 = arith.truncf %193 : vector<4x8x16xf32> to vector<4x8x16xbf16>
    "tpu.trace_start"() <{level = 10 : i32, message = "bqk,bkd->bqd"}> : () -> ()
    %cst_80 = arith.constant dense<0.000000e+00> : vector<4x8x16xf32>
    %213 = tpu.matmul %211, %212, %cst_80 {dimension_numbers = #tpu.dot_dimension_numbers<[2], [1], [1], [2], [0, 0, 0, 1, 1, 2], [0], [0]>} : vector<4x8x8xbf16>, vector<4x8x16xbf16>, vector<4x8x16xf32> -> vector<4x8x16xf32>
    "tpu.trace_stop"() : () -> ()
    %214 = vector.extract_strided_slice %213 {offsets = [0, 0, 0], sizes = [2, 8, 16], strides = [1, 1, 1]} : vector<4x8x16xf32> to vector<2x8x16xf32>
    %215 = vector.shape_cast %214 : vector<2x8x16xf32> to vector<16x16xf32>
    %216 = vector.extract_strided_slice %213 {offsets = [2, 0, 0], sizes = [2, 8, 16], strides = [1, 1, 1]} : vector<4x8x16xf32> to vector<2x8x16xf32>
    %217 = vector.shape_cast %216 : vector<2x8x16xf32> to vector<16x16xf32>
    %218 = tpu.concatenate %215, %217 in 1 : vector<16x16xf32>, vector<16x16xf32> -> vector<16x32xf32>
    %219 = arith.truncf %218 : vector<16x32xf32> to vector<16x32xbf16>
    %c1_81 = arith.constant 1 : index
    %c0_82 = arith.constant 0 : index
    %c0_83 = arith.constant 0 : index
    %220 = vector.load %arg6[%c1_81, %c0_82, %c0_83] : memref<2x32x32xbf16, #tpu.memory_space<vmem>>, vector<1x32x32xbf16>
    %221 = vector.shape_cast %220 : vector<1x32x32xbf16> to vector<32x32xbf16>
    %cst_84 = arith.constant dense<0.000000e+00> : vector<16x32xf32>
    %222 = tpu.matmul %219, %221, %cst_84 {dimension_numbers = #tpu.dot_dimension_numbers<[1], [0], [0], [1], [0, 0, 1, 1], [], []>} : vector<16x32xbf16>, vector<32x32xbf16>, vector<16x32xf32> -> vector<16x32xf32>
    %c1_85 = arith.constant 1 : index
    %c0_86 = arith.constant 0 : index
    %c0_87 = arith.constant 0 : index
    %223 = vector.load %arg7[%c1_85, %c0_86, %c0_87] : memref<2x1x32xf32, #tpu.memory_space<vmem>>, vector<1x1x32xf32>
    %224 = vector.shape_cast %223 : vector<1x1x32xf32> to vector<1x32xf32>
    %225 = vector.broadcast %224 : vector<1x32xf32> to vector<16x32xf32>
    %226 = arith.addf %222, %225 : vector<16x32xf32>
    %227 = arith.addf %226, %170 : vector<16x32xf32>
    %c1_88 = arith.constant 1 : index
    %c0_89 = arith.constant 0 : index
    %c0_90 = arith.constant 0 : index
    %228 = vector.load %arg8[%c1_88, %c0_89, %c0_90] : memref<2x1x32xf32, #tpu.memory_space<vmem>>, vector<1x1x32xf32>
    %229 = vector.shape_cast %228 : vector<1x1x32xf32> to vector<1x32xf32>
    %c1_91 = arith.constant 1 : index
    %c0_92 = arith.constant 0 : index
    %c0_93 = arith.constant 0 : index
    %230 = vector.load %arg9[%c1_91, %c0_92, %c0_93] : memref<2x1x32xf32, #tpu.memory_space<vmem>>, vector<1x1x32xf32>
    %231 = vector.shape_cast %230 : vector<1x1x32xf32> to vector<1x32xf32>
    %cst_94 = arith.constant dense<0.000000e+00> : vector<16xf32>
    %232 = vector.multi_reduction <add>, %227, %cst_94 [1] : vector<16x32xf32> to vector<16xf32>
    %233 = vector.shape_cast %232 : vector<16xf32> to vector<16x1xf32>
    %cst_95 = arith.constant 3.200000e+01 : f32
    %234 = vector.broadcast %cst_95 : f32 to vector<16x1xf32>
    %235 = arith.divf %233, %234 : vector<16x1xf32>
    %236 = vector.broadcast %235 : vector<16x1xf32> to vector<16x32xf32>
    %237 = arith.subf %227, %236 : vector<16x32xf32>
    %238 = arith.mulf %237, %237 : vector<16x32xf32>
    %cst_96 = arith.constant dense<0.000000e+00> : vector<16xf32>
    %239 = vector.multi_reduction <add>, %238, %cst_96 [1] : vector<16x32xf32> to vector<16xf32>
    %240 = vector.shape_cast %239 : vector<16xf32> to vector<16x1xf32>
    %cst_97 = arith.constant 3.200000e+01 : f32
    %241 = vector.broadcast %cst_97 : f32 to vector<16x1xf32>
    %242 = arith.divf %240, %241 : vector<16x1xf32>
    %243 = vector.broadcast %235 : vector<16x1xf32> to vector<16x32xf32>
    %244 = arith.subf %227, %243 : vector<16x32xf32>
    %cst_98 = arith.constant 9.99999974E-6 : f32
    %245 = vector.broadcast %cst_98 : f32 to vector<16x1xf32>
    %246 = arith.addf %242, %245 : vector<16x1xf32>
    %247 = math.rsqrt %246 : vector<16x1xf32>
    %248 = vector.broadcast %247 : vector<16x1xf32> to vector<16x32xf32>
    %249 = arith.mulf %244, %248 : vector<16x32xf32>
    %250 = vector.broadcast %229 : vector<1x32xf32> to vector<16x32xf32>
    %251 = arith.mulf %249, %250 : vector<16x32xf32>
    %252 = vector.broadcast %231 : vector<1x32xf32> to vector<16x32xf32>
    %253 = arith.addf %251, %252 : vector<16x32xf32>
    %254 = arith.truncf %253 : vector<16x32xf32> to vector<16x32xbf16>
    %c1_99 = arith.constant 1 : index
    %c0_100 = arith.constant 0 : index
    %c0_101 = arith.constant 0 : index
    %255 = vector.load %arg10[%c1_99, %c0_100, %c0_101] : memref<2x32x64xbf16, #tpu.memory_space<vmem>>, vector<1x32x64xbf16>
    %256 = vector.shape_cast %255 : vector<1x32x64xbf16> to vector<32x64xbf16>
    %cst_102 = arith.constant dense<0.000000e+00> : vector<16x64xf32>
    %257 = tpu.matmul %254, %256, %cst_102 {dimension_numbers = #tpu.dot_dimension_numbers<[1], [0], [0], [1], [0, 0, 1, 1], [], []>} : vector<16x32xbf16>, vector<32x64xbf16>, vector<16x64xf32> -> vector<16x64xf32>
    %c1_103 = arith.constant 1 : index
    %c0_104 = arith.constant 0 : index
    %c0_105 = arith.constant 0 : index
    %258 = vector.load %arg11[%c1_103, %c0_104, %c0_105] : memref<2x1x64xf32, #tpu.memory_space<vmem>>, vector<1x1x64xf32>
    %259 = vector.shape_cast %258 : vector<1x1x64xf32> to vector<1x64xf32>
    %260 = vector.broadcast %259 : vector<1x64xf32> to vector<16x64xf32>
    %261 = arith.addf %257, %260 : vector<16x64xf32>
    %cst_106 = arith.constant 5.000000e-01 : f32
    %262 = vector.broadcast %cst_106 : f32 to vector<16x64xf32>
    %263 = arith.mulf %262, %261 : vector<16x64xf32>
    %cst_107 = arith.constant 4.471500e-02 : f32
    %264 = vector.broadcast %cst_107 : f32 to vector<16x64xf32>
    %265 = arith.mulf %264, %261 : vector<16x64xf32>
    %266 = arith.mulf %265, %261 : vector<16x64xf32>
    %267 = arith.mulf %266, %261 : vector<16x64xf32>
    %268 = arith.addf %261, %267 : vector<16x64xf32>
    %cst_108 = arith.constant 0.797884583 : f32
    %269 = vector.broadcast %cst_108 : f32 to vector<16x64xf32>
    %270 = arith.mulf %269, %268 : vector<16x64xf32>
    %271 = math.tanh %270 : vector<16x64xf32>
    %cst_109 = arith.constant 1.000000e+00 : f32
    %272 = vector.broadcast %cst_109 : f32 to vector<16x64xf32>
    %273 = arith.addf %272, %271 : vector<16x64xf32>
    %274 = arith.mulf %263, %273 : vector<16x64xf32>
    %275 = arith.truncf %274 : vector<16x64xf32> to vector<16x64xbf16>
    %c1_110 = arith.constant 1 : index
    %c0_111 = arith.constant 0 : index
    %c0_112 = arith.constant 0 : index
    %276 = vector.load %arg12[%c1_110, %c0_111, %c0_112] : memref<2x64x32xbf16, #tpu.memory_space<vmem>>, vector<1x64x32xbf16>
    %277 = vector.shape_cast %276 : vector<1x64x32xbf16> to vector<64x32xbf16>
    %cst_113 = arith.constant dense<0.000000e+00> : vector<16x32xf32>
    %278 = tpu.matmul %275, %277, %cst_113 {dimension_numbers = #tpu.dot_dimension_numbers<[1], [0], [0], [1], [0, 0, 1, 1], [], []>} : vector<16x64xbf16>, vector<64x32xbf16>, vector<16x32xf32> -> vector<16x32xf32>
    %c1_114 = arith.constant 1 : index
    %c0_115 = arith.constant 0 : index
    %c0_116 = arith.constant 0 : index
    %279 = vector.load %arg13[%c1_114, %c0_115, %c0_116] : memref<2x1x32xf32, #tpu.memory_space<vmem>>, vector<1x1x32xf32>
    %280 = vector.shape_cast %279 : vector<1x1x32xf32> to vector<1x32xf32>
    %281 = vector.broadcast %280 : vector<1x32xf32> to vector<16x32xf32>
    %282 = arith.addf %278, %281 : vector<16x32xf32>
    %283 = arith.addf %282, %253 : vector<16x32xf32>
    %c1_117 = arith.constant 1 : index
    %c0_118 = arith.constant 0 : index
    %c0_119 = arith.constant 0 : index
    %284 = vector.load %arg14[%c1_117, %c0_118, %c0_119] : memref<2x1x32xf32, #tpu.memory_space<vmem>>, vector<1x1x32xf32>
    %285 = vector.shape_cast %284 : vector<1x1x32xf32> to vector<1x32xf32>
    %c1_120 = arith.constant 1 : index
    %c0_121 = arith.constant 0 : index
    %c0_122 = arith.constant 0 : index
    %286 = vector.load %arg15[%c1_120, %c0_121, %c0_122] : memref<2x1x32xf32, #tpu.memory_space<vmem>>, vector<1x1x32xf32>
    %287 = vector.shape_cast %286 : vector<1x1x32xf32> to vector<1x32xf32>
    %cst_123 = arith.constant dense<0.000000e+00> : vector<16xf32>
    %288 = vector.multi_reduction <add>, %283, %cst_123 [1] : vector<16x32xf32> to vector<16xf32>
    %289 = vector.shape_cast %288 : vector<16xf32> to vector<16x1xf32>
    %cst_124 = arith.constant 3.200000e+01 : f32
    %290 = vector.broadcast %cst_124 : f32 to vector<16x1xf32>
    %291 = arith.divf %289, %290 : vector<16x1xf32>
    %292 = vector.broadcast %291 : vector<16x1xf32> to vector<16x32xf32>
    %293 = arith.subf %283, %292 : vector<16x32xf32>
    %294 = arith.mulf %293, %293 : vector<16x32xf32>
    %cst_125 = arith.constant dense<0.000000e+00> : vector<16xf32>
    %295 = vector.multi_reduction <add>, %294, %cst_125 [1] : vector<16x32xf32> to vector<16xf32>
    %296 = vector.shape_cast %295 : vector<16xf32> to vector<16x1xf32>
    %cst_126 = arith.constant 3.200000e+01 : f32
    %297 = vector.broadcast %cst_126 : f32 to vector<16x1xf32>
    %298 = arith.divf %296, %297 : vector<16x1xf32>
    %299 = vector.broadcast %291 : vector<16x1xf32> to vector<16x32xf32>
    %300 = arith.subf %283, %299 : vector<16x32xf32>
    %cst_127 = arith.constant 9.99999974E-6 : f32
    %301 = vector.broadcast %cst_127 : f32 to vector<16x1xf32>
    %302 = arith.addf %298, %301 : vector<16x1xf32>
    %303 = math.rsqrt %302 : vector<16x1xf32>
    %304 = vector.broadcast %303 : vector<16x1xf32> to vector<16x32xf32>
    %305 = arith.mulf %300, %304 : vector<16x32xf32>
    %306 = vector.broadcast %285 : vector<1x32xf32> to vector<16x32xf32>
    %307 = arith.mulf %305, %306 : vector<16x32xf32>
    %308 = vector.broadcast %287 : vector<1x32xf32> to vector<16x32xf32>
    %309 = arith.addf %307, %308 : vector<16x32xf32>
    %310 = vector.shape_cast %309 : vector<16x32xf32> to vector<2x8x32xf32>
    %311 = vector.extract_strided_slice %310 {offsets = [0, 0, 0], sizes = [2, 1, 32], strides = [1, 1, 1]} : vector<2x8x32xf32> to vector<2x1x32xf32>
    %312 = vector.shape_cast %311 : vector<2x1x32xf32> to vector<2x32xf32>
    %c0_128 = arith.constant 0 : index
    %c0_129 = arith.constant 0 : index
    %313 = vector.load %arg16[%c0_128, %c0_129] : memref<32x2xf32, #tpu.memory_space<vmem>>, vector<32x2xf32>
    %cst_130 = arith.constant dense<0.000000e+00> : vector<2x2xf32>
    %314 = tpu.matmul %312, %313, %cst_130 {dimension_numbers = #tpu.dot_dimension_numbers<[1], [0], [0], [1], [0, 0, 1, 1], [], []>} : vector<2x32xf32>, vector<32x2xf32>, vector<2x2xf32> -> vector<2x2xf32>
    %c0_131 = arith.constant 0 : index
    %c0_132 = arith.constant 0 : index
    %315 = vector.load %arg17[%c0_131, %c0_132] : memref<1x2xf32, #tpu.memory_space<vmem>>, vector<1x2xf32>
    %316 = vector.broadcast %315 : vector<1x2xf32> to vector<2x2xf32>
    %317 = arith.addf %314, %316 : vector<2x2xf32>
    %c0_133 = arith.constant 0 : index
    %c0_134 = arith.constant 0 : index
    %318 = vector.load %arg18[%c0_133, %c0_134] : memref<2x2xf32, #tpu.memory_space<vmem>>, vector<2x2xf32>
    tpu.vector_store %arg18[%c0_133, %c0_134], %317 {strides = array<i32>} : memref<2x2xf32, #tpu.memory_space<vmem>>, vector<2x2xf32>,
    return
  }
}

</mosaic_0001>

<llo_original>
// kernel: _lambda_.1
$region0: #{_lambda_.1}
  #allocation0 [shape = 'u32[]', space=smem, size = 0x4, offset = 0x4, fixed_abs, tag = 'smem constant byte address 0x4 - core index']
  #allocation1 [shape = 'u32[144,128]{1,0:T(1,128)}', space=vmem, size = 0x12000, scoped, tag = 'internal scratch']
  %s0 = inlined_call_operand.vmem [shape: f32[16,32], index: 0, kind: input, shape index: {}]
  %s1 = inlined_call_operand.vmem [shape: f32[2,8], index: 1, kind: input, shape index: {}]
  %s2 = inlined_call_operand.vmem [shape: f32[1,32], index: 2, kind: input, shape index: {}]
  %s3 = inlined_call_operand.vmem [shape: f32[1,32], index: 3, kind: input, shape index: {}]
  %s4 = inlined_call_operand.vmem [shape: bf16[2,32,96], index: 4, kind: input, shape index: {}]
  %s5 = inlined_call_operand.vmem [shape: f32[2,1,96], index: 5, kind: input, shape index: {}]
  %s6 = inlined_call_operand.vmem [shape: bf16[2,32,32], index: 6, kind: input, shape index: {}]
  %s7 = inlined_call_operand.vmem [shape: f32[2,1,32], index: 7, kind: input, shape index: {}]
  %s8 = inlined_call_operand.vmem [shape: f32[2,1,32], index: 8, kind: input, shape index: {}]
  %s9 = inlined_call_operand.vmem [shape: f32[2,1,32], index: 9, kind: input, shape index: {}]
  %s10 = inlined_call_operand.vmem [shape: bf16[2,32,64], index: 10, kind: input, shape index: {}]
  %s11 = inlined_call_operand.vmem [shape: f32[2,1,64], index: 11, kind: input, shape index: {}]
  %s12 = inlined_call_operand.vmem [shape: bf16[2,64,32], index: 12, kind: input, shape index: {}]
  %s13 = inlined_call_operand.vmem [shape: f32[2,1,32], index: 13, kind: input, shape index: {}]
  %s14 = inlined_call_operand.vmem [shape: f32[2,1,32], index: 14, kind: input, shape index: {}]
  %s15 = inlined_call_operand.vmem [shape: f32[2,1,32], index: 15, kind: input, shape index: {}]
  %s16 = inlined_call_operand.vmem [shape: f32[32,2], index: 16, kind: input, shape index: {}]
  %s17 = inlined_call_operand.vmem [shape: f32[1,2], index: 17, kind: input, shape index: {}]
  %s18 = inlined_call_operand.hbm [shape: f32[2,2], index: 18, kind: output, shape index: {}]
  %s19 = sld [smem:[#allocation0]]
  $region82: #{_lambda_.1} parent=0
    _
  %s21 = ssub.s32 1, %s19
  %s22 = scalar_select 0, %s21, %s19
  $region1: #{_lambda_.1} parent=0
    #allocation2 [shape = 'u8[1024]{0}', space=vmem, size = 0x400, scoped, tag = 'output window, operand 0, single buffered']
    #allocation3 [shape = 's32[1]{0}', space=sflag, size = 0x4, scoped, tag = 'scoped memory for _lambda_.1']
    %23 = vsyncpa [#allocation3], 0
    // Predicated region
    $region2: #{_lambda_.1} parent=1 // pred_check
      _
    $region3: #{_lambda_.1} parent=1 // pred_check_branch
      %25 = sbr.rel (0) target = $region5
    $region4: #{_lambda_.1} parent=1 // pred_region
      _
    $region5: #{_lambda_.1} parent=1 // pred_fallthru
      _
    // Predicated region
    $region6: #{_lambda_.1} parent=1 // pred_check
      _
    $region7: #{_lambda_.1} parent=1 // pred_check_branch
      %27 = sbr.rel (0) target = $region9
    $region8: #{_lambda_.1} parent=1 // pred_region
      _
    $region9: #{_lambda_.1} parent=1 // pred_fallthru
      _
    // Predicated region
    $region10: #{_lambda_.1} parent=1 // pred_check
      _
    $region11: #{_lambda_.1} parent=1 // pred_check_branch
      %29 = sbr.rel (0) target = $region13
    $region12: #{_lambda_.1} parent=1 // pred_region
      _
    $region13: #{_lambda_.1} parent=1 // pred_fallthru
      _
    // Predicated region
    $region14: #{_lambda_.1} parent=1 // pred_check
      _
    $region15: #{_lambda_.1} parent=1 // pred_check_branch
      %31 = sbr.rel (0) target = $region17
    $region16: #{_lambda_.1} parent=1 // pred_region
      _
    $region17: #{_lambda_.1} parent=1 // pred_fallthru
      _
    // Predicated region
    $region18: #{_lambda_.1} parent=1 // pred_check
      _
    $region19: #{_lambda_.1} parent=1 // pred_check_branch
      %33 = sbr.rel (0) target = $region21
    $region20: #{_lambda_.1} parent=1 // pred_region
      _
    $region21: #{_lambda_.1} parent=1 // pred_fallthru
      _
    // Predicated region
    $region22: #{_lambda_.1} parent=1 // pred_check
      _
    $region23: #{_lambda_.1} parent=1 // pred_check_branch
      %35 = sbr.rel (0) target = $region25
    $region24: #{_lambda_.1} parent=1 // pred_region
      _
    $region25: #{_lambda_.1} parent=1 // pred_fallthru
      _
    // Predicated region
    $region26: #{_lambda_.1} parent=1 // pred_check
      _
    $region27: #{_lambda_.1} parent=1 // pred_check_branch
      %37 = sbr.rel (0) target = $region29
    $region28: #{_lambda_.1} parent=1 // pred_region
      _
    $region29: #{_lambda_.1} parent=1 // pred_fallthru
      _
    // Predicated region
    $region30: #{_lambda_.1} parent=1 // pred_check
      _
    $region31: #{_lambda_.1} parent=1 // pred_check_branch
      %39 = sbr.rel (0) target = $region33
    $region32: #{_lambda_.1} parent=1 // pred_region
      _
    $region33: #{_lambda_.1} parent=1 // pred_fallthru
      _
    // Predicated region
    $region34: #{_lambda_.1} parent=1 // pred_check
      _
    $region35: #{_lambda_.1} parent=1 // pred_check_branch
      %41 = sbr.rel (0) target = $region37
    $region36: #{_lambda_.1} parent=1 // pred_region
      _
    $region37: #{_lambda_.1} parent=1 // pred_fallthru
      _
    // Predicated region
    $region38: #{_lambda_.1} parent=1 // pred_check
      _
    $region39: #{_lambda_.1} parent=1 // pred_check_branch
      %43 = sbr.rel (0) target = $region41
    $region40: #{_lambda_.1} parent=1 // pred_region
      _
    $region41: #{_lambda_.1} parent=1 // pred_fallthru
      _
    // Predicated region
    $region42: #{_lambda_.1} parent=1 // pred_check
      _
    $region43: #{_lambda_.1} parent=1 // pred_check_branch
      %45 = sbr.rel (0) target = $region45
    $region44: #{_lambda_.1} parent=1 // pred_region
      _
    $region45: #{_lambda_.1} parent=1 // pred_fallthru
      _
    // Predicated region
    $region46: #{_lambda_.1} parent=1 // pred_check
      _
    $region47: #{_lambda_.1} parent=1 // pred_check_branch
      %47 = sbr.rel (0) target = $region49
    $region48: #{_lambda_.1} parent=1 // pred_region
      _
    $region49: #{_lambda_.1} parent=1 // pred_fallthru
      _
    // Predicated region
    $region50: #{_lambda_.1} parent=1 // pred_check
      _
    $region51: #{_lambda_.1} parent=1 // pred_check_branch
      %49 = sbr.rel (0) target = $region53
    $region52: #{_lambda_.1} parent=1 // pred_region
      _
    $region53: #{_lambda_.1} parent=1 // pred_fallthru
      _
    // Predicated region
    $region54: #{_lambda_.1} parent=1 // pred_check
      _
    $region55: #{_lambda_.1} parent=1 // pred_check_branch
      %51 = sbr.rel (0) target = $region57
    $region56: #{_lambda_.1} parent=1 // pred_region
      _
    $region57: #{_lambda_.1} parent=1 // pred_fallthru
      _
    // Predicated region
    $region58: #{_lambda_.1} parent=1 // pred_check
      _
    $region59: #{_lambda_.1} parent=1 // pred_check_branch
      %53 = sbr.rel (0) target = $region61
    $region60: #{_lambda_.1} parent=1 // pred_region
      _
    $region61: #{_lambda_.1} parent=1 // pred_fallthru
      _
    // Predicated region
    $region62: #{_lambda_.1} parent=1 // pred_check
      _
    $region63: #{_lambda_.1} parent=1 // pred_check_branch
      %55 = sbr.rel (0) target = $region65
    $region64: #{_lambda_.1} parent=1 // pred_region
      _
    $region65: #{_lambda_.1} parent=1 // pred_fallthru
      _
    // Predicated region
    $region66: #{_lambda_.1} parent=1 // pred_check
      _
    $region67: #{_lambda_.1} parent=1 // pred_check_branch
      %57 = sbr.rel (0) target = $region69
    $region68: #{_lambda_.1} parent=1 // pred_region
      _
    $region69: #{_lambda_.1} parent=1 // pred_fallthru
      _
    // Predicated region
    $region70: #{_lambda_.1} parent=1 // pred_check
      _
    $region71: #{_lambda_.1} parent=1 // pred_check_branch
      %59 = sbr.rel (0) target = $region73
    $region72: #{_lambda_.1} parent=1 // pred_region
      _
    $region73: #{_lambda_.1} parent=1 // pred_fallthru
      _
    %v61 = vld [vmem:[%s1] sm:$0x3]
    %v64 = vunpack.c.l.s4 1966171168
    %v65 = vunpack.c.0.s8 %v64
    %v66 = vlaneseq
    %v67 = vshrl.u32 %v66, 7
    %v68 = vsub.s32 %v65, %v67
    %v69 = vrot.slane %v61, %v68
    %v70 = vcombine.high %v69, %v69
    %v72 = vunpack.c.l.s4 1966171168
    %v73 = vunpack.c.0.s8 %v72
    %v74 = vlaneseq
    %v75 = vshrl.u32 %v74, 7
    %v76 = vsub.s32 %v73, %v75
    %v77 = vrot.slane %v69, %v76
    %v79 = vunpack.c.l.s4 1966171168
    %v80 = vunpack.c.0.s8 %v79
    %v81 = vlaneseq
    %v82 = vshrl.u32 %v81, 7
    %v83 = vsub.s32 %v80, %v82
    %v84 = vrot.slane %v70, %v83
    %v85 = vld [vmem:[%s0] sm:$0xff]
    %v86 = vld [vmem:[%s0 + $0x8] sm:$0xff]
    %v87 = vld [vmem:[%s2] sm:$0x1]
    %v88 = vld [vmem:[%s3] sm:$0x1]
    %vm89 = vcmask 261120
    %v90 = vsel %vm89, %v85, 0.0
    %91 = vadd.xlane.f32.xlu0 %v90
    %v92 = vpop.xlane.xlu0 %91
    %v93 = vsel %vm89, %v86, 0.0
    %94 = vadd.xlane.f32.xlu0 %v93
    %v95 = vpop.xlane.xlu0 %94
    %v96 = vrcp.pop 32.0
    %v97 = vmul.f32 %v92, %v96
    %v98 = vmul.f32 %v95, %v96
    %v99 = vsub.f32 %v85, %v97
    %v100 = vsub.f32 %v86, %v98
    %v101 = vmul.f32 %v99, %v99
    %v102 = vmul.f32 %v100, %v100
    %v103 = vsel %vm89, %v101, 0.0
    %104 = vadd.xlane.f32.xlu0 %v103
    %v105 = vpop.xlane.xlu0 %104
    %v106 = vsel %vm89, %v102, 0.0
    %107 = vadd.xlane.f32.xlu0 %v106
    %v108 = vpop.xlane.xlu0 %107
    %v109 = vmul.f32 %v105, %v96
    %v110 = vmul.f32 %v108, %v96
    %v111 = vadd.f32 %v109, 1e-05
    %v112 = vadd.f32 %v110, 1e-05
    %v113 = vrsqrt.pop %v111
    %v114 = vrsqrt.pop %v112
    %v115 = vmul.f32 %v99, %v113
    %v116 = vmul.f32 %v100, %v114
    %v118 = vlaneseq
    %v119 = vshrl.u32 %v118, 7
    %v120 = vsub.s32 0, %v119
    %v121 = vrot.slane %v87, %v120
    %v123 = vmul.f32 %v115, %v121
    %v124 = vmul.f32 %v116, %v121
    %v126 = vlaneseq
    %v127 = vshrl.u32 %v126, 7
    %v128 = vsub.s32 0, %v127
    %v129 = vrot.slane %v88, %v128
    %v131 = vadd.f32 %v123, %v129
    %v132 = vadd.f32 %v124, %v129
    %v133 = vpack.c.bf16 %v132, %v131
    %v134 = vld [vmem:[%s4] sm:$0xf]
    %v135 = vld [vmem:[%s4 + $0x4] sm:$0xf]
    %v136 = vld [vmem:[%s4 + $0x8] sm:$0xf]
    %v137 = vld [vmem:[%s4 + $0xc] sm:$0xf]
    %v138 = vld [vmem:[%s5] sm:$0x1]
    %v140 = vlaneseq
    %v141 = vshrl.u32 %v140, 7
    %v142 = vsub.s32 0, %v141
    %v143 = vrot.slane %v138, %v142
    %v149 = vunpack.c.l.b16 %v134
    %v150 = vunpack.c.l.b16 %v135
    %v151 = vunpack.c.l.b16 %v136
    %v152 = vunpack.c.l.b16 %v137
    %v153 = vpack.c.b16 %v150, %v149
    %v154 = vpack.c.b16 %v152, %v151
    %v158 = vsel %vm89, %v133, 0
    %160 = vmatprep.subr.bf16.mxu0 0
    %161 = vmatpush1.bf16.msra.mxu0 %v153
    %162 = vmatprep.subr.bf16.mxu0 0
    %163 = vmatpush1.bf16.msra.mxu0 %v154
    %164 = vmatprep.subr.bf16.mxu0 0
    %165 = vmatpush1.bf16.msra.mxu0 0
    %166 = vmatprep.subr.bf16.mxu0 0
    %167 = vmatpush1.bf16.msra.mxu0 0
    %168 = vmatprep.subr.bf16.mxu0 0
    %169 = vmatpush1.bf16.msra.mxu0 0
    %170 = vmatprep.subr.bf16.mxu0 0
    %171 = vmatpush1.bf16.msra.mxu0 0
    %172 = vmatprep.subr.bf16.mxu0 0
    %173 = vmatpush1.bf16.msra.mxu0 0
    %174 = vmatprep.subr.bf16.mxu0 0
    %175 = vmatpush1.bf16.msra.mxu0 0
    %176 = vmatprep.subr.bf16.mxu0 0
    %177 = vmatpush1.bf16.msra.mxu0 0
    %178 = vmatprep.subr.bf16.mxu0 0
    %179 = vmatpush1.bf16.msra.mxu0 0
    %180 = vmatprep.subr.bf16.mxu0 0
    %181 = vmatpush1.bf16.msra.mxu0 0
    %182 = vmatprep.subr.bf16.mxu0 0
    %183 = vmatpush1.bf16.msra.mxu0 0
    %184 = vmatprep.subr.bf16.mxu0 0
    %185 = vmatpush1.bf16.msra.mxu0 0
    %186 = vmatprep.subr.bf16.mxu0 0
    %187 = vmatpush1.bf16.msra.mxu0 0
    %188 = vmatprep.subr.bf16.mxu0 0
    %189 = vmatpush1.bf16.msra.mxu0 0
    %190 = vmatprep.subr.bf16.mxu0 0
    %191 = vmatpush1.bf16.msra.mxu0 0
    %192 = vmatprep.mubr.bf16.mxu0 0
    %193 = vmatmul.mubr.bf16.gmra.mrb[0].mxu0 %v158
    %v194 = vpop.f32.mrb[0].mxu0
    %v195 = vadd.f32 %v143, %v194
    %v196 = vpop.f32.mrb[0].mxu0
    %v197 = vpop.f32.mrb[0].mxu0
    %v198 = vadd.f32 %v143, %v197
    %v199 = vpop.f32.mrb[0].mxu0
    %200 = vdwg.mxu0
    %203 = vrot.lane.b32.xlu0 %v195, 112
    %v204 = vpop.permute.xlu0 %203
    %205 = vrot.lane.b32.xlu0 %v198, 112
    %v206 = vpop.permute.xlu0 %205
    %v209 = vpack.c.bf16 %v195, %v195
    %v210 = vpack.c.bf16 %v198, %v198
    %v211 = vpack.c.bf16 %v204, %v204
    %v212 = vpack.c.bf16 %v206, %v206
    %214 = vrot.lane.b32.xlu0 %v209, 96
    %v215 = vpop.permute.xlu0 %214
    %vm216 = vcmask 130048
    %v218 = vsel %vm216, %v209, 0
    %v221 = vsel %vm216, %v215, 0
    %223 = vmatprep.subr.bf16.mxu0 0
    %224 = vmatpush1.bf16.xpose.msra.mxu0 %v221
    %225 = vmatprep.subr.bf16.mxu0 0
    %226 = vmatpush1.bf16.xpose.msra.mxu0 0
    %227 = vmatprep.subr.bf16.mxu0 0
    %228 = vmatpush1.bf16.xpose.msra.mxu0 0
    %229 = vmatprep.subr.bf16.mxu0 0
    %230 = vmatpush1.bf16.xpose.msra.mxu0 0
    %231 = vmatprep.subr.bf16.mxu0 0
    %232 = vmatpush1.bf16.xpose.msra.mxu0 0
    %233 = vmatprep.subr.bf16.mxu0 0
    %234 = vmatpush1.bf16.xpose.msra.mxu0 0
    %235 = vmatprep.subr.bf16.mxu0 0
    %236 = vmatpush1.bf16.xpose.msra.mxu0 0
    %237 = vmatprep.subr.bf16.mxu0 0
    %238 = vmatpush1.bf16.xpose.msra.mxu0 0
    %239 = vmatprep.subr.bf16.mxu0 0
    %240 = vmatpush1.bf16.xpose.msra.mxu0 0
    %241 = vmatprep.subr.bf16.mxu0 0
    %242 = vmatpush1.bf16.xpose.msra.mxu0 0
    %243 = vmatprep.subr.bf16.mxu0 0
    %244 = vmatpush1.bf16.xpose.msra.mxu0 0
    %245 = vmatprep.subr.bf16.mxu0 0
    %246 = vmatpush1.bf16.xpose.msra.mxu0 0
    %247 = vmatprep.subr.bf16.mxu0 0
    %248 = vmatpush1.bf16.xpose.msra.mxu0 0
    %249 = vmatprep.subr.bf16.mxu0 0
    %250 = vmatpush1.bf16.xpose.msra.mxu0 0
    %251 = vmatprep.subr.bf16.mxu0 0
    %252 = vmatpush1.bf16.xpose.msra.mxu0 0
    %253 = vmatprep.subr.bf16.mxu0 0
    %254 = vmatpush1.bf16.xpose.msra.mxu0 0
    %255 = vmatprep.mubr.bf16.mxu0 0
    %256 = vmatmul.mubr.bf16.gmra.mrb[0].mxu0 %v218
    %v257 = vpop.f32.mrb[0].mxu0
    %v258 = vadd.f32 0.0, %v257
    %v259 = vpop.f32.mrb[0].mxu0
    %v260 = vpop.f32.mrb[0].mxu0
    %v261 = vpop.f32.mrb[0].mxu0
    %262 = vdwg.mxu0
    %264 = vrot.lane.b32.xlu0 %v210, 96
    %v265 = vpop.permute.xlu0 %264
    %v267 = vsel %vm216, %v210, 0
    %v270 = vsel %vm216, %v265, 0
    %272 = vmatprep.subr.bf16.mxu0 0
    %273 = vmatpush1.bf16.xpose.msra.mxu0 %v270
    %274 = vmatprep.subr.bf16.mxu0 0
    %275 = vmatpush1.bf16.xpose.msra.mxu0 0
    %276 = vmatprep.subr.bf16.mxu0 0
    %277 = vmatpush1.bf16.xpose.msra.mxu0 0
    %278 = vmatprep.subr.bf16.mxu0 0
    %279 = vmatpush1.bf16.xpose.msra.mxu0 0
    %280 = vmatprep.subr.bf16.mxu0 0
    %281 = vmatpush1.bf16.xpose.msra.mxu0 0
    %282 = vmatprep.subr.bf16.mxu0 0
    %283 = vmatpush1.bf16.xpose.msra.mxu0 0
    %284 = vmatprep.subr.bf16.mxu0 0
    %285 = vmatpush1.bf16.xpose.msra.mxu0 0
    %286 = vmatprep.subr.bf16.mxu0 0
    %287 = vmatpush1.bf16.xpose.msra.mxu0 0
    %288 = vmatprep.subr.bf16.mxu0 0
    %289 = vmatpush1.bf16.xpose.msra.mxu0 0
    %290 = vmatprep.subr.bf16.mxu0 0
    %291 = vmatpush1.bf16.xpose.msra.mxu0 0
    %292 = vmatprep.subr.bf16.mxu0 0
    %293 = vmatpush1.bf16.xpose.msra.mxu0 0
    %294 = vmatprep.subr.bf16.mxu0 0
    %295 = vmatpush1.bf16.xpose.msra.mxu0 0
    %296 = vmatprep.subr.bf16.mxu0 0
    %297 = vmatpush1.bf16.xpose.msra.mxu0 0
    %298 = vmatprep.subr.bf16.mxu0 0
    %299 = vmatpush1.bf16.xpose.msra.mxu0 0
    %300 = vmatprep.subr.bf16.mxu0 0
    %301 = vmatpush1.bf16.xpose.msra.mxu0 0
    %302 = vmatprep.subr.bf16.mxu0 0
    %303 = vmatpush1.bf16.xpose.msra.mxu0 0
    %304 = vmatprep.mubr.bf16.mxu0 0
    %305 = vmatmul.mubr.bf16.gmra.mrb[0].mxu0 %v267
    %v306 = vpop.f32.mrb[0].mxu0
    %v307 = vadd.f32 0.0, %v306
    %v308 = vpop.f32.mrb[0].mxu0
    %v309 = vpop.f32.mrb[0].mxu0
    %v310 = vpop.f32.mrb[0].mxu0
    %311 = vdwg.mxu0
    %313 = vrot.lane.b32.xlu0 %v211, 96
    %v314 = vpop.permute.xlu0 %313
    %v316 = vsel %vm216, %v211, 0
    %v319 = vsel %vm216, %v314, 0
    %321 = vmatprep.subr.bf16.mxu0 0
    %322 = vmatpush1.bf16.xpose.msra.mxu0 %v319
    %323 = vmatprep.subr.bf16.mxu0 0
    %324 = vmatpush1.bf16.xpose.msra.mxu0 0
    %325 = vmatprep.subr.bf16.mxu0 0
    %326 = vmatpush1.bf16.xpose.msra.mxu0 0
    %327 = vmatprep.subr.bf16.mxu0 0
    %328 = vmatpush1.bf16.xpose.msra.mxu0 0
    %329 = vmatprep.subr.bf16.mxu0 0
    %330 = vmatpush1.bf16.xpose.msra.mxu0 0
    %331 = vmatprep.subr.bf16.mxu0 0
    %332 = vmatpush1.bf16.xpose.msra.mxu0 0
    %333 = vmatprep.subr.bf16.mxu0 0
    %334 = vmatpush1.bf16.xpose.msra.mxu0 0
    %335 = vmatprep.subr.bf16.mxu0 0
    %336 = vmatpush1.bf16.xpose.msra.mxu0 0
    %337 = vmatprep.subr.bf16.mxu0 0
    %338 = vmatpush1.bf16.xpose.msra.mxu0 0
    %339 = vmatprep.subr.bf16.mxu0 0
    %340 = vmatpush1.bf16.xpose.msra.mxu0 0
    %341 = vmatprep.subr.bf16.mxu0 0
    %342 = vmatpush1.bf16.xpose.msra.mxu0 0
    %343 = vmatprep.subr.bf16.mxu0 0
    %344 = vmatpush1.bf16.xpose.msra.mxu0 0
    %345 = vmatprep.subr.bf16.mxu0 0
    %346 = vmatpush1.bf16.xpose.msra.mxu0 0
    %347 = vmatprep.subr.bf16.mxu0 0
    %348 = vmatpush1.bf16.xpose.msra.mxu0 0
    %349 = vmatprep.subr.bf16.mxu0 0
    %350 = vmatpush1.bf16.xpose.msra.mxu0 0
    %351 = vmatprep.subr.bf16.mxu0 0
    %352 = vmatpush1.bf16.xpose.msra.mxu0 0
    %353 = vmatprep.mubr.bf16.mxu0 0
    %354 = vmatmul.mubr.bf16.gmra.mrb[0].mxu0 %v316
    %v355 = vpop.f32.mrb[0].mxu0
    %v356 = vadd.f32 0.0, %v355
    %v357 = vpop.f32.mrb[0].mxu0
    %v358 = vpop.f32.mrb[0].mxu0
    %v359 = vpop.f32.mrb[0].mxu0
    %360 = vdwg.mxu0
    %362 = vrot.lane.b32.xlu0 %v212, 96
    %v363 = vpop.permute.xlu0 %362
    %v365 = vsel %vm216, %v212, 0
    %v368 = vsel %vm216, %v363, 0
    %370 = vmatprep.subr.bf16.mxu0 0
    %371 = vmatpush1.bf16.xpose.msra.mxu0 %v368
    %372 = vmatprep.subr.bf16.mxu0 0
    %373 = vmatpush1.bf16.xpose.msra.mxu0 0
    %374 = vmatprep.subr.bf16.mxu0 0
    %375 = vmatpush1.bf16.xpose.msra.mxu0 0
    %376 = vmatprep.subr.bf16.mxu0 0
    %377 = vmatpush1.bf16.xpose.msra.mxu0 0
    %378 = vmatprep.subr.bf16.mxu0 0
    %379 = vmatpush1.bf16.xpose.msra.mxu0 0
    %380 = vmatprep.subr.bf16.mxu0 0
    %381 = vmatpush1.bf16.xpose.msra.mxu0 0
    %382 = vmatprep.subr.bf16.mxu0 0
    %383 = vmatpush1.bf16.xpose.msra.mxu0 0
    %384 = vmatprep.subr.bf16.mxu0 0
    %385 = vmatpush1.bf16.xpose.msra.mxu0 0
    %386 = vmatprep.subr.bf16.mxu0 0
    %387 = vmatpush1.bf16.xpose.msra.mxu0 0
    %388 = vmatprep.subr.bf16.mxu0 0
    %389 = vmatpush1.bf16.xpose.msra.mxu0 0
    %390 = vmatprep.subr.bf16.mxu0 0
    %391 = vmatpush1.bf16.xpose.msra.mxu0 0
    %392 = vmatprep.subr.bf16.mxu0 0
    %393 = vmatpush1.bf16.xpose.msra.mxu0 0
    %394 = vmatprep.subr.bf16.mxu0 0
    %395 = vmatpush1.bf16.xpose.msra.mxu0 0
    %396 = vmatprep.subr.bf16.mxu0 0
    %397 = vmatpush1.bf16.xpose.msra.mxu0 0
    %398 = vmatprep.subr.bf16.mxu0 0
    %399 = vmatpush1.bf16.xpose.msra.mxu0 0
    %400 = vmatprep.subr.bf16.mxu0 0
    %401 = vmatpush1.bf16.xpose.msra.mxu0 0
    %402 = vmatprep.mubr.bf16.mxu0 0
    %403 = vmatmul.mubr.bf16.gmra.mrb[0].mxu0 %v365
    %v404 = vpop.f32.mrb[0].mxu0
    %v405 = vadd.f32 0.0, %v404
    %v406 = vpop.f32.mrb[0].mxu0
    %v407 = vpop.f32.mrb[0].mxu0
    %v408 = vpop.f32.mrb[0].mxu0
    %409 = vdwg.mxu0
    %v410 = vmul.f32 %v258, 0.25
    %v411 = vmul.f32 %v307, 0.25
    %v412 = vmul.f32 %v356, 0.25
    %v413 = vmul.f32 %v405, 0.25
    %v414 = vlaneseq
    %v415 = vshrl.u32 %v414, 7
    %v416 = vsub.s32 0, %v415
    %v417 = vrot.slane %v77, %v416
    %v418 = vlaneseq
    %v419 = vshrl.u32 %v418, 7
    %v420 = vsub.s32 0, %v419
    %v421 = vrot.slane %v84, %v420
    %v424 = vadd.f32 %v410, %v417
    %v425 = vadd.f32 %v411, %v421
    %v426 = vadd.f32 %v412, %v417
    %v427 = vadd.f32 %v413, %v421
    %vm428 = vcmask 64512
    %v429 = vsel %vm428, %v424, -inf
    %430 = vmax.xlane.f32.xlu0 %v429
    %v431 = vpop.xlane.xlu0 %430
    %v432 = vsel %vm428, %v425, -inf
    %433 = vmax.xlane.f32.xlu0 %v432
    %v434 = vpop.xlane.xlu0 %433
    %v435 = vsel %vm428, %v426, -inf
    %436 = vmax.xlane.f32.xlu0 %v435
    %v437 = vpop.xlane.xlu0 %436
    %v438 = vsel %vm428, %v427, -inf
    %439 = vmax.xlane.f32.xlu0 %v438
    %v440 = vpop.xlane.xlu0 %439
    %v441 = vsub.f32 %v424, %v431
    %v442 = vsub.f32 %v425, %v434
    %v443 = vsub.f32 %v426, %v437
    %v444 = vsub.f32 %v427, %v440
    %v445 = vmul.f32 %v441, 1.442695
    %v446 = vpow.pop %v445
    %v447 = vmul.f32 %v442, 1.442695
    %v448 = vpow.pop %v447
    %v449 = vmul.f32 %v443, 1.442695
    %v450 = vpow.pop %v449
    %v451 = vmul.f32 %v444, 1.442695
    %v452 = vpow.pop %v451
    %v453 = vsel %vm428, %v446, 0.0
    %454 = vadd.xlane.f32.xlu0 %v453
    %v455 = vpop.xlane.xlu0 %454
    %v456 = vsel %vm428, %v448, 0.0
    %457 = vadd.xlane.f32.xlu0 %v456
    %v458 = vpop.xlane.xlu0 %457
    %v459 = vsel %vm428, %v450, 0.0
    %460 = vadd.xlane.f32.xlu0 %v459
    %v461 = vpop.xlane.xlu0 %460
    %v462 = vsel %vm428, %v452, 0.0
    %463 = vadd.xlane.f32.xlu0 %v462
    %v464 = vpop.xlane.xlu0 %463
    %v465 = vrcp.pop %v455
    %v466 = vrcp.pop %v458
    %v467 = vrcp.pop %v461
    %v468 = vrcp.pop %v464
    %v469 = vmul.f32 %v446, %v465
    %v470 = vmul.f32 %v448, %v466
    %v471 = vmul.f32 %v450, %v467
    %v472 = vmul.f32 %v452, %v468
    %v473 = vpack.c.bf16 %v469, %v469
    %v474 = vpack.c.bf16 %v470, %v470
    %v475 = vpack.c.bf16 %v471, %v471
    %v476 = vpack.c.bf16 %v472, %v472
    %477 = vrot.lane.b32.xlu0 %v209, 64
    %v478 = vpop.permute.xlu0 %477
    %v480 = vsel %vm428, %v473, 0
    %vm482 = vcmask 1043456
    %v484 = vsel %vm482, %v478, 0
    %486 = vmatprep.subr.bf16.mxu0 0
    %487 = vmatpush1.bf16.msra.mxu0 %v484
    %488 = vmatprep.subr.bf16.mxu0 0
    %489 = vmatpush1.bf16.msra.mxu0 0
    %490 = vmatprep.subr.bf16.mxu0 0
    %491 = vmatpush1.bf16.msra.mxu0 0
    %492 = vmatprep.subr.bf16.mxu0 0
    %493 = vmatpush1.bf16.msra.mxu0 0
    %494 = vmatprep.subr.bf16.mxu0 0
    %495 = vmatpush1.bf16.msra.mxu0 0
    %496 = vmatprep.subr.bf16.mxu0 0
    %497 = vmatpush1.bf16.msra.mxu0 0
    %498 = vmatprep.subr.bf16.mxu0 0
    %499 = vmatpush1.bf16.msra.mxu0 0
    %500 = vmatprep.subr.bf16.mxu0 0
    %501 = vmatpush1.bf16.msra.mxu0 0
    %502 = vmatprep.subr.bf16.mxu0 0
    %503 = vmatpush1.bf16.msra.mxu0 0
    %504 = vmatprep.subr.bf16.mxu0 0
    %505 = vmatpush1.bf16.msra.mxu0 0
    %506 = vmatprep.subr.bf16.mxu0 0
    %507 = vmatpush1.bf16.msra.mxu0 0
    %508 = vmatprep.subr.bf16.mxu0 0
    %509 = vmatpush1.bf16.msra.mxu0 0
    %510 = vmatprep.subr.bf16.mxu0 0
    %511 = vmatpush1.bf16.msra.mxu0 0
    %512 = vmatprep.subr.bf16.mxu0 0
    %513 = vmatpush1.bf16.msra.mxu0 0
    %514 = vmatprep.subr.bf16.mxu0 0
    %515 = vmatpush1.bf16.msra.mxu0 0
    %516 = vmatprep.subr.bf16.mxu0 0
    %517 = vmatpush1.bf16.msra.mxu0 0
    %518 = vmatprep.mubr.bf16.mxu0 0
    %519 = vmatmul.mubr.bf16.gmra.mrb[0].mxu0 %v480
    %v520 = vpop.f32.mrb[0].mxu0
    %v521 = vadd.f32 0.0, %v520
    %v522 = vpop.f32.mrb[0].mxu0
    %v523 = vpop.f32.mrb[0].mxu0
    %v524 = vpop.f32.mrb[0].mxu0
    %525 = vdwg.mxu0
    %526 = vrot.lane.b32.xlu0 %v210, 64
    %v527 = vpop.permute.xlu0 %526
    %v529 = vsel %vm428, %v474, 0
    %v532 = vsel %vm482, %v527, 0
    %534 = vmatprep.subr.bf16.mxu0 0
    %535 = vmatpush1.bf16.msra.mxu0 %v532
    %536 = vmatprep.subr.bf16.mxu0 0
    %537 = vmatpush1.bf16.msra.mxu0 0
    %538 = vmatprep.subr.bf16.mxu0 0
    %539 = vmatpush1.bf16.msra.mxu0 0
    %540 = vmatprep.subr.bf16.mxu0 0
    %541 = vmatpush1.bf16.msra.mxu0 0
    %542 = vmatprep.subr.bf16.mxu0 0
    %543 = vmatpush1.bf16.msra.mxu0 0
    %544 = vmatprep.subr.bf16.mxu0 0
    %545 = vmatpush1.bf16.msra.mxu0 0
    %546 = vmatprep.subr.bf16.mxu0 0
    %547 = vmatpush1.bf16.msra.mxu0 0
    %548 = vmatprep.subr.bf16.mxu0 0
    %549 = vmatpush1.bf16.msra.mxu0 0
    %550 = vmatprep.subr.bf16.mxu0 0
    %551 = vmatpush1.bf16.msra.mxu0 0
    %552 = vmatprep.subr.bf16.mxu0 0
    %553 = vmatpush1.bf16.msra.mxu0 0
    %554 = vmatprep.subr.bf16.mxu0 0
    %555 = vmatpush1.bf16.msra.mxu0 0
    %556 = vmatprep.subr.bf16.mxu0 0
    %557 = vmatpush1.bf16.msra.mxu0 0
    %558 = vmatprep.subr.bf16.mxu0 0
    %559 = vmatpush1.bf16.msra.mxu0 0
    %560 = vmatprep.subr.bf16.mxu0 0
    %561 = vmatpush1.bf16.msra.mxu0 0
    %562 = vmatprep.subr.bf16.mxu0 0
    %563 = vmatpush1.bf16.msra.mxu0 0
    %564 = vmatprep.subr.bf16.mxu0 0
    %565 = vmatpush1.bf16.msra.mxu0 0
    %566 = vmatprep.mubr.bf16.mxu0 0
    %567 = vmatmul.mubr.bf16.gmra.mrb[0].mxu0 %v529
    %v568 = vpop.f32.mrb[0].mxu0
    %v569 = vadd.f32 0.0, %v568
    %v570 = vpop.f32.mrb[0].mxu0
    %v571 = vpop.f32.mrb[0].mxu0
    %v572 = vpop.f32.mrb[0].mxu0
    %573 = vdwg.mxu0
    %574 = vrot.lane.b32.xlu0 %v211, 64
    %v575 = vpop.permute.xlu0 %574
    %v577 = vsel %vm428, %v475, 0
    %v580 = vsel %vm482, %v575, 0
    %582 = vmatprep.subr.bf16.mxu0 0
    %583 = vmatpush1.bf16.msra.mxu0 %v580
    %584 = vmatprep.subr.bf16.mxu0 0
    %585 = vmatpush1.bf16.msra.mxu0 0
    %586 = vmatprep.subr.bf16.mxu0 0
    %587 = vmatpush1.bf16.msra.mxu0 0
    %588 = vmatprep.subr.bf16.mxu0 0
    %589 = vmatpush1.bf16.msra.mxu0 0
    %590 = vmatprep.subr.bf16.mxu0 0
    %591 = vmatpush1.bf16.msra.mxu0 0
    %592 = vmatprep.subr.bf16.mxu0 0
    %593 = vmatpush1.bf16.msra.mxu0 0
    %594 = vmatprep.subr.bf16.mxu0 0
    %595 = vmatpush1.bf16.msra.mxu0 0
    %596 = vmatprep.subr.bf16.mxu0 0
    %597 = vmatpush1.bf16.msra.mxu0 0
    %598 = vmatprep.subr.bf16.mxu0 0
    %599 = vmatpush1.bf16.msra.mxu0 0
    %600 = vmatprep.subr.bf16.mxu0 0
    %601 = vmatpush1.bf16.msra.mxu0 0
    %602 = vmatprep.subr.bf16.mxu0 0
    %603 = vmatpush1.bf16.msra.mxu0 0
    %604 = vmatprep.subr.bf16.mxu0 0
    %605 = vmatpush1.bf16.msra.mxu0 0
    %606 = vmatprep.subr.bf16.mxu0 0
    %607 = vmatpush1.bf16.msra.mxu0 0
    %608 = vmatprep.subr.bf16.mxu0 0
    %609 = vmatpush1.bf16.msra.mxu0 0
    %610 = vmatprep.subr.bf16.mxu0 0
    %611 = vmatpush1.bf16.msra.mxu0 0
    %612 = vmatprep.subr.bf16.mxu0 0
    %613 = vmatpush1.bf16.msra.mxu0 0
    %614 = vmatprep.mubr.bf16.mxu0 0
    %615 = vmatmul.mubr.bf16.gmra.mrb[0].mxu0 %v577
    %v616 = vpop.f32.mrb[0].mxu0
    %v617 = vadd.f32 0.0, %v616
    %v618 = vpop.f32.mrb[0].mxu0
    %v619 = vpop.f32.mrb[0].mxu0
    %v620 = vpop.f32.mrb[0].mxu0
    %621 = vdwg.mxu0
    %622 = vrot.lane.b32.xlu0 %v212, 64
    %v623 = vpop.permute.xlu0 %622
    %v625 = vsel %vm428, %v476, 0
    %v628 = vsel %vm482, %v623, 0
    %630 = vmatprep.subr.bf16.mxu0 0
    %631 = vmatpush1.bf16.msra.mxu0 %v628
    %632 = vmatprep.subr.bf16.mxu0 0
    %633 = vmatpush1.bf16.msra.mxu0 0
    %634 = vmatprep.subr.bf16.mxu0 0
    %635 = vmatpush1.bf16.msra.mxu0 0
    %636 = vmatprep.subr.bf16.mxu0 0
    %637 = vmatpush1.bf16.msra.mxu0 0
    %638 = vmatprep.subr.bf16.mxu0 0
    %639 = vmatpush1.bf16.msra.mxu0 0
    %640 = vmatprep.subr.bf16.mxu0 0
    %641 = vmatpush1.bf16.msra.mxu0 0
    %642 = vmatprep.subr.bf16.mxu0 0
    %643 = vmatpush1.bf16.msra.mxu0 0
    %644 = vmatprep.subr.bf16.mxu0 0
    %645 = vmatpush1.bf16.msra.mxu0 0
    %646 = vmatprep.subr.bf16.mxu0 0
    %647 = vmatpush1.bf16.msra.mxu0 0
    %648 = vmatprep.subr.bf16.mxu0 0
    %649 = vmatpush1.bf16.msra.mxu0 0
    %650 = vmatprep.subr.bf16.mxu0 0
    %651 = vmatpush1.bf16.msra.mxu0 0
    %652 = vmatprep.subr.bf16.mxu0 0
    %653 = vmatpush1.bf16.msra.mxu0 0
    %654 = vmatprep.subr.bf16.mxu0 0
    %655 = vmatpush1.bf16.msra.mxu0 0
    %656 = vmatprep.subr.bf16.mxu0 0
    %657 = vmatpush1.bf16.msra.mxu0 0
    %658 = vmatprep.subr.bf16.mxu0 0
    %659 = vmatpush1.bf16.msra.mxu0 0
    %660 = vmatprep.subr.bf16.mxu0 0
    %661 = vmatpush1.bf16.msra.mxu0 0
    %662 = vmatprep.mubr.bf16.mxu0 0
    %663 = vmatmul.mubr.bf16.gmra.mrb[0].mxu0 %v625
    %v664 = vpop.f32.mrb[0].mxu0
    %v665 = vadd.f32 0.0, %v664
    %v666 = vpop.f32.mrb[0].mxu0
    %v667 = vpop.f32.mrb[0].mxu0
    %v668 = vpop.f32.mrb[0].mxu0
    %669 = vdwg.mxu0
    %672 = vrot.lane.b32.xlu0 %v617, 16
    %v673 = vpop.permute.xlu0 %672
    %674 = vrot.lane.b32.xlu0 %v665, 16
    %v675 = vpop.permute.xlu0 %674
    %v678 = vsel %vm216, %v521, %v673
    %v679 = vsel %vm216, %v569, %v675
    %v680 = vpack.c.bf16 %v679, %v678
    %v681 = vld [vmem:[%s6] sm:$0xf]
    %v682 = vld [vmem:[%s6 + $0x4] sm:$0xf]
    %v683 = vld [vmem:[%s6 + $0x8] sm:$0xf]
    %v684 = vld [vmem:[%s6 + $0xc] sm:$0xf]
    %v685 = vld [vmem:[%s7] sm:$0x1]
    %v687 = vlaneseq
    %v688 = vshrl.u32 %v687, 7
    %v689 = vsub.s32 0, %v688
    %v690 = vrot.slane %v685, %v689
    %v696 = vunpack.c.l.b16 %v681
    %v697 = vunpack.c.l.b16 %v682
    %v698 = vunpack.c.l.b16 %v683
    %v699 = vunpack.c.l.b16 %v684
    %v700 = vpack.c.b16 %v697, %v696
    %v701 = vpack.c.b16 %v699, %v698
    %v705 = vsel %vm89, %v680, 0
    %707 = vmatprep.subr.bf16.mxu0 0
    %708 = vmatpush1.bf16.msra.mxu0 %v700
    %709 = vmatprep.subr.bf16.mxu0 0
    %710 = vmatpush1.bf16.msra.mxu0 %v701
    %711 = vmatprep.subr.bf16.mxu0 0
    %712 = vmatpush1.bf16.msra.mxu0 0
    %713 = vmatprep.subr.bf16.mxu0 0
    %714 = vmatpush1.bf16.msra.mxu0 0
    %715 = vmatprep.subr.bf16.mxu0 0
    %716 = vmatpush1.bf16.msra.mxu0 0
    %717 = vmatprep.subr.bf16.mxu0 0
    %718 = vmatpush1.bf16.msra.mxu0 0
    %719 = vmatprep.subr.bf16.mxu0 0
    %720 = vmatpush1.bf16.msra.mxu0 0
    %721 = vmatprep.subr.bf16.mxu0 0
    %722 = vmatpush1.bf16.msra.mxu0 0
    %723 = vmatprep.subr.bf16.mxu0 0
    %724 = vmatpush1.bf16.msra.mxu0 0
    %725 = vmatprep.subr.bf16.mxu0 0
    %726 = vmatpush1.bf16.msra.mxu0 0
    %727 = vmatprep.subr.bf16.mxu0 0
    %728 = vmatpush1.bf16.msra.mxu0 0
    %729 = vmatprep.subr.bf16.mxu0 0
    %730 = vmatpush1.bf16.msra.mxu0 0
    %731 = vmatprep.subr.bf16.mxu0 0
    %732 = vmatpush1.bf16.msra.mxu0 0
    %733 = vmatprep.subr.bf16.mxu0 0
    %734 = vmatpush1.bf16.msra.mxu0 0
    %735 = vmatprep.subr.bf16.mxu0 0
    %736 = vmatpush1.bf16.msra.mxu0 0
    %737 = vmatprep.subr.bf16.mxu0 0
    %738 = vmatpush1.bf16.msra.mxu0 0
    %739 = vmatprep.mubr.bf16.mxu0 0
    %740 = vmatmul.mubr.bf16.gmra.mrb[0].mxu0 %v705
    %v741 = vpop.f32.mrb[0].mxu0
    %v742 = vadd.f32 %v690, %v741
    %v743 = vpop.f32.mrb[0].mxu0
    %v744 = vpop.f32.mrb[0].mxu0
    %v745 = vadd.f32 %v690, %v744
    %v746 = vpop.f32.mrb[0].mxu0
    %747 = vdwg.mxu0
    %v748 = vadd.f32 %v742, %v131
    %v749 = vadd.f32 %v745, %v132
    %v750 = vld [vmem:[%s8] sm:$0x1]
    %v751 = vld [vmem:[%s9] sm:$0x1]
    %v752 = vsel %vm89, %v748, 0.0
    %753 = vadd.xlane.f32.xlu0 %v752
    %v754 = vpop.xlane.xlu0 %753
    %v755 = vsel %vm89, %v749, 0.0
    %756 = vadd.xlane.f32.xlu0 %v755
    %v757 = vpop.xlane.xlu0 %756
    %v758 = vmul.f32 %v754, %v96
    %v759 = vmul.f32 %v757, %v96
    %v760 = vsub.f32 %v748, %v758
    %v761 = vsub.f32 %v749, %v759
    %v762 = vmul.f32 %v760, %v760
    %v763 = vmul.f32 %v761, %v761
    %v764 = vsel %vm89, %v762, 0.0
    %765 = vadd.xlane.f32.xlu0 %v764
    %v766 = vpop.xlane.xlu0 %765
    %v767 = vsel %vm89, %v763, 0.0
    %768 = vadd.xlane.f32.xlu0 %v767
    %v769 = vpop.xlane.xlu0 %768
    %v770 = vmul.f32 %v766, %v96
    %v771 = vmul.f32 %v769, %v96
    %v772 = vadd.f32 %v770, 1e-05
    %v773 = vadd.f32 %v771, 1e-05
    %v774 = vrsqrt.pop %v772
    %v775 = vrsqrt.pop %v773
    %v776 = vmul.f32 %v760, %v774
    %v777 = vmul.f32 %v761, %v775
    %v779 = vlaneseq
    %v780 = vshrl.u32 %v779, 7
    %v781 = vsub.s32 0, %v780
    %v782 = vrot.slane %v750, %v781
    %v784 = vmul.f32 %v776, %v782
    %v785 = vmul.f32 %v777, %v782
    %v787 = vlaneseq
    %v788 = vshrl.u32 %v787, 7
    %v789 = vsub.s32 0, %v788
    %v790 = vrot.slane %v751, %v789
    %v792 = vadd.f32 %v784, %v790
    %v793 = vadd.f32 %v785, %v790
    %v794 = vpack.c.bf16 %v793, %v792
    %v795 = vld [vmem:[%s10] sm:$0xf]
    %v796 = vld [vmem:[%s10 + $0x4] sm:$0xf]
    %v797 = vld [vmem:[%s10 + $0x8] sm:$0xf]
    %v798 = vld [vmem:[%s10 + $0xc] sm:$0xf]
    %v799 = vld [vmem:[%s11] sm:$0x1]
    %v801 = vlaneseq
    %v802 = vshrl.u32 %v801, 7
    %v803 = vsub.s32 0, %v802
    %v804 = vrot.slane %v799, %v803
    %v810 = vunpack.c.l.b16 %v795
    %v811 = vunpack.c.l.b16 %v796
    %v812 = vunpack.c.l.b16 %v797
    %v813 = vunpack.c.l.b16 %v798
    %v814 = vpack.c.b16 %v811, %v810
    %v815 = vpack.c.b16 %v813, %v812
    %v819 = vsel %vm89, %v794, 0
    %821 = vmatprep.subr.bf16.mxu0 0
    %822 = vmatpush1.bf16.msra.mxu0 %v814
    %823 = vmatprep.subr.bf16.mxu0 0
    %824 = vmatpush1.bf16.msra.mxu0 %v815
    %825 = vmatprep.subr.bf16.mxu0 0
    %826 = vmatpush1.bf16.msra.mxu0 0
    %827 = vmatprep.subr.bf16.mxu0 0
    %828 = vmatpush1.bf16.msra.mxu0 0
    %829 = vmatprep.subr.bf16.mxu0 0
    %830 = vmatpush1.bf16.msra.mxu0 0
    %831 = vmatprep.subr.bf16.mxu0 0
    %832 = vmatpush1.bf16.msra.mxu0 0
    %833 = vmatprep.subr.bf16.mxu0 0
    %834 = vmatpush1.bf16.msra.mxu0 0
    %835 = vmatprep.subr.bf16.mxu0 0
    %836 = vmatpush1.bf16.msra.mxu0 0
    %837 = vmatprep.subr.bf16.mxu0 0
    %838 = vmatpush1.bf16.msra.mxu0 0
    %839 = vmatprep.subr.bf16.mxu0 0
    %840 = vmatpush1.bf16.msra.mxu0 0
    %841 = vmatprep.subr.bf16.mxu0 0
    %842 = vmatpush1.bf16.msra.mxu0 0
    %843 = vmatprep.subr.bf16.mxu0 0
    %844 = vmatpush1.bf16.msra.mxu0 0
    %845 = vmatprep.subr.bf16.mxu0 0
    %846 = vmatpush1.bf16.msra.mxu0 0
    %847 = vmatprep.subr.bf16.mxu0 0
    %848 = vmatpush1.bf16.msra.mxu0 0
    %849 = vmatprep.subr.bf16.mxu0 0
    %850 = vmatpush1.bf16.msra.mxu0 0
    %851 = vmatprep.subr.bf16.mxu0 0
    %852 = vmatpush1.bf16.msra.mxu0 0
    %853 = vmatprep.mubr.bf16.mxu0 0
    %854 = vmatmul.mubr.bf16.gmra.mrb[0].mxu0 %v819
    %v855 = vpop.f32.mrb[0].mxu0
    %v856 = vadd.f32 %v804, %v855
    %v857 = vpop.f32.mrb[0].mxu0
    %v858 = vpop.f32.mrb[0].mxu0
    %v859 = vadd.f32 %v804, %v858
    %v860 = vpop.f32.mrb[0].mxu0
    %861 = vdwg.mxu0
    %v862 = vmul.f32 %v856, 0.5
    %v863 = vmul.f32 %v859, 0.5
    %v864 = vmul.f32 %v856, 0.044715
    %v865 = vmul.f32 %v859, 0.044715
    %v866 = vmul.f32 %v864, %v856
    %v867 = vmul.f32 %v865, %v859
    %v868 = vmul.f32 %v866, %v856
    %v869 = vmul.f32 %v867, %v859
    %v870 = vadd.f32 %v856, %v868
    %v871 = vadd.f32 %v859, %v869
    %v872 = vmul.f32 %v870, 0.7978846
    %v873 = vmul.f32 %v871, 0.7978846
    %v874 = vtanh.pop %v872
    %v875 = vtanh.pop %v873
    %v876 = vadd.f32 %v874, 1.0
    %v877 = vadd.f32 %v875, 1.0
    %v878 = vmul.f32 %v862, %v876
    %v879 = vmul.f32 %v863, %v877
    %v880 = vpack.c.bf16 %v879, %v878
    %v881 = vld [vmem:[%s12] sm:$0xf]
    %v882 = vld [vmem:[%s12 + $0x4] sm:$0xf]
    %v883 = vld [vmem:[%s12 + $0x8] sm:$0xf]
    %v884 = vld [vmem:[%s12 + $0xc] sm:$0xf]
    %v885 = vld [vmem:[%s12 + $0x10] sm:$0xf]
    %v886 = vld [vmem:[%s12 + $0x14] sm:$0xf]
    %v887 = vld [vmem:[%s12 + $0x18] sm:$0xf]
    %v888 = vld [vmem:[%s12 + $0x1c] sm:$0xf]
    %v889 = vld [vmem:[%s13] sm:$0x1]
    %v891 = vlaneseq
    %v892 = vshrl.u32 %v891, 7
    %v893 = vsub.s32 0, %v892
    %v894 = vrot.slane %v889, %v893
    %v904 = vunpack.c.l.b16 %v881
    %v905 = vunpack.c.l.b16 %v882
    %v906 = vunpack.c.l.b16 %v883
    %v907 = vunpack.c.l.b16 %v884
    %v908 = vunpack.c.l.b16 %v885
    %v909 = vunpack.c.l.b16 %v886
    %v910 = vunpack.c.l.b16 %v887
    %v911 = vunpack.c.l.b16 %v888
    %v912 = vpack.c.b16 %v905, %v904
    %v913 = vpack.c.b16 %v907, %v906
    %v914 = vpack.c.b16 %v909, %v908
    %v915 = vpack.c.b16 %v911, %v910
    %vm920 = vcmask 523264
    %v922 = vsel %vm920, %v880, 0
    %924 = vmatprep.subr.bf16.mxu0 0
    %925 = vmatpush1.bf16.msra.mxu0 %v912
    %926 = vmatprep.subr.bf16.mxu0 0
    %927 = vmatpush1.bf16.msra.mxu0 %v913
    %928 = vmatprep.subr.bf16.mxu0 0
    %929 = vmatpush1.bf16.msra.mxu0 %v914
    %930 = vmatprep.subr.bf16.mxu0 0
    %931 = vmatpush1.bf16.msra.mxu0 %v915
    %932 = vmatprep.subr.bf16.mxu0 0
    %933 = vmatpush1.bf16.msra.mxu0 0
    %934 = vmatprep.subr.bf16.mxu0 0
    %935 = vmatpush1.bf16.msra.mxu0 0
    %936 = vmatprep.subr.bf16.mxu0 0
    %937 = vmatpush1.bf16.msra.mxu0 0
    %938 = vmatprep.subr.bf16.mxu0 0
    %939 = vmatpush1.bf16.msra.mxu0 0
    %940 = vmatprep.subr.bf16.mxu0 0
    %941 = vmatpush1.bf16.msra.mxu0 0
    %942 = vmatprep.subr.bf16.mxu0 0
    %943 = vmatpush1.bf16.msra.mxu0 0
    %944 = vmatprep.subr.bf16.mxu0 0
    %945 = vmatpush1.bf16.msra.mxu0 0
    %946 = vmatprep.subr.bf16.mxu0 0
    %947 = vmatpush1.bf16.msra.mxu0 0
    %948 = vmatprep.subr.bf16.mxu0 0
    %949 = vmatpush1.bf16.msra.mxu0 0
    %950 = vmatprep.subr.bf16.mxu0 0
    %951 = vmatpush1.bf16.msra.mxu0 0
    %952 = vmatprep.subr.bf16.mxu0 0
    %953 = vmatpush1.bf16.msra.mxu0 0
    %954 = vmatprep.subr.bf16.mxu0 0
    %955 = vmatpush1.bf16.msra.mxu0 0
    %956 = vmatprep.mubr.bf16.mxu0 0
    %957 = vmatmul.mubr.bf16.gmra.mrb[0].mxu0 %v922
    %v958 = vpop.f32.mrb[0].mxu0
    %v959 = vadd.f32 %v894, %v958
    %v960 = vpop.f32.mrb[0].mxu0
    %v961 = vpop.f32.mrb[0].mxu0
    %v962 = vadd.f32 %v894, %v961
    %v963 = vpop.f32.mrb[0].mxu0
    %964 = vdwg.mxu0
    %v965 = vadd.f32 %v959, %v792
    %v966 = vadd.f32 %v962, %v793
    %v967 = vld [vmem:[%s14] sm:$0x1]
    %v968 = vld [vmem:[%s15] sm:$0x1]
    %v969 = vsel %vm89, %v965, 0.0
    %970 = vadd.xlane.f32.xlu0 %v969
    %v971 = vpop.xlane.xlu0 %970
    %v972 = vsel %vm89, %v966, 0.0
    %973 = vadd.xlane.f32.xlu0 %v972
    %v974 = vpop.xlane.xlu0 %973
    %v975 = vmul.f32 %v971, %v96
    %v976 = vmul.f32 %v974, %v96
    %v977 = vsub.f32 %v965, %v975
    %v978 = vsub.f32 %v966, %v976
    %v979 = vmul.f32 %v977, %v977
    %v980 = vmul.f32 %v978, %v978
    %v981 = vsel %vm89, %v979, 0.0
    %982 = vadd.xlane.f32.xlu0 %v981
    %v983 = vpop.xlane.xlu0 %982
    %v984 = vsel %vm89, %v980, 0.0
    %985 = vadd.xlane.f32.xlu0 %v984
    %v986 = vpop.xlane.xlu0 %985
    %v987 = vmul.f32 %v983, %v96
    %v988 = vmul.f32 %v986, %v96
    %v989 = vadd.f32 %v987, 1e-05
    %v990 = vadd.f32 %v988, 1e-05
    %v991 = vrsqrt.pop %v989
    %v992 = vrsqrt.pop %v990
    %v993 = vmul.f32 %v977, %v991
    %v994 = vmul.f32 %v978, %v992
    %v996 = vlaneseq
    %v997 = vshrl.u32 %v996, 7
    %v998 = vsub.s32 0, %v997
    %v999 = vrot.slane %v967, %v998
    %v1001 = vmul.f32 %v993, %v999
    %v1002 = vmul.f32 %v994, %v999
    %v1004 = vlaneseq
    %v1005 = vshrl.u32 %v1004, 7
    %v1006 = vsub.s32 0, %v1005
    %v1007 = vrot.slane %v968, %v1006
    %v1009 = vadd.f32 %v1001, %v1007
    %v1010 = vadd.f32 %v1002, %v1007
    %v1011 = vpack.c.bf16 %v1010, %v1009
    %s1012 = scalar_lea.vmem %s4, 16
    %v1013 = vld [vmem:[%s1012] sm:$0xf]
    %v1014 = vld [vmem:[%s1012 + $0x4] sm:$0xf]
    %v1015 = vld [vmem:[%s1012 + $0x8] sm:$0xf]
    %v1016 = vld [vmem:[%s1012 + $0xc] sm:$0xf]
    %s1017 = scalar_lea.vmem %s5, 1
    %v1018 = vld [vmem:[%s1017] sm:$0x1]
    %v1020 = vlaneseq
    %v1021 = vshrl.u32 %v1020, 7
    %v1022 = vsub.s32 0, %v1021
    %v1023 = vrot.slane %v1018, %v1022
    %v1029 = vunpack.c.l.b16 %v1013
    %v1030 = vunpack.c.l.b16 %v1014
    %v1031 = vunpack.c.l.b16 %v1015
    %v1032 = vunpack.c.l.b16 %v1016
    %v1033 = vpack.c.b16 %v1030, %v1029
    %v1034 = vpack.c.b16 %v1032, %v1031
    %v1038 = vsel %vm89, %v1011, 0
    %1040 = vmatprep.subr.bf16.mxu0 0
    %1041 = vmatpush1.bf16.msra.mxu0 %v1033
    %1042 = vmatprep.subr.bf16.mxu0 0
    %1043 = vmatpush1.bf16.msra.mxu0 %v1034
    %1044 = vmatprep.subr.bf16.mxu0 0
    %1045 = vmatpush1.bf16.msra.mxu0 0
    %1046 = vmatprep.subr.bf16.mxu0 0
    %1047 = vmatpush1.bf16.msra.mxu0 0
    %1048 = vmatprep.subr.bf16.mxu0 0
    %1049 = vmatpush1.bf16.msra.mxu0 0
    %1050 = vmatprep.subr.bf16.mxu0 0
    %1051 = vmatpush1.bf16.msra.mxu0 0
    %1052 = vmatprep.subr.bf16.mxu0 0
    %1053 = vmatpush1.bf16.msra.mxu0 0
    %1054 = vmatprep.subr.bf16.mxu0 0
    %1055 = vmatpush1.bf16.msra.mxu0 0
    %1056 = vmatprep.subr.bf16.mxu0 0
    %1057 = vmatpush1.bf16.msra.mxu0 0
    %1058 = vmatprep.subr.bf16.mxu0 0
    %1059 = vmatpush1.bf16.msra.mxu0 0
    %1060 = vmatprep.subr.bf16.mxu0 0
    %1061 = vmatpush1.bf16.msra.mxu0 0
    %1062 = vmatprep.subr.bf16.mxu0 0
    %1063 = vmatpush1.bf16.msra.mxu0 0
    %1064 = vmatprep.subr.bf16.mxu0 0
    %1065 = vmatpush1.bf16.msra.mxu0 0
    %1066 = vmatprep.subr.bf16.mxu0 0
    %1067 = vmatpush1.bf16.msra.mxu0 0
    %1068 = vmatprep.subr.bf16.mxu0 0
    %1069 = vmatpush1.bf16.msra.mxu0 0
    %1070 = vmatprep.subr.bf16.mxu0 0
    %1071 = vmatpush1.bf16.msra.mxu0 0
    %1072 = vmatprep.mubr.bf16.mxu0 0
    %1073 = vmatmul.mubr.bf16.gmra.mrb[0].mxu0 %v1038
    %v1074 = vpop.f32.mrb[0].mxu0
    %v1075 = vadd.f32 %v1023, %v1074
    %v1076 = vpop.f32.mrb[0].mxu0
    %v1077 = vpop.f32.mrb[0].mxu0
    %v1078 = vadd.f32 %v1023, %v1077
    %v1079 = vpop.f32.mrb[0].mxu0
    %1080 = vdwg.mxu0
    %1083 = vrot.lane.b32.xlu0 %v1075, 112
    %v1084 = vpop.permute.xlu0 %1083
    %1085 = vrot.lane.b32.xlu0 %v1078, 112
    %v1086 = vpop.permute.xlu0 %1085
    %v1089 = vpack.c.bf16 %v1075, %v1075
    %v1090 = vpack.c.bf16 %v1078, %v1078
    %v1091 = vpack.c.bf16 %v1084, %v1084
    %v1092 = vpack.c.bf16 %v1086, %v1086
    %1094 = vrot.lane.b32.xlu0 %v1089, 96
    %v1095 = vpop.permute.xlu0 %1094
    %v1097 = vsel %vm216, %v1089, 0
    %v1100 = vsel %vm216, %v1095, 0
    %1102 = vmatprep.subr.bf16.mxu0 0
    %1103 = vmatpush1.bf16.xpose.msra.mxu0 %v1100
    %1104 = vmatprep.subr.bf16.mxu0 0
    %1105 = vmatpush1.bf16.xpose.msra.mxu0 0
    %1106 = vmatprep.subr.bf16.mxu0 0
    %1107 = vmatpush1.bf16.xpose.msra.mxu0 0
    %1108 = vmatprep.subr.bf16.mxu0 0
    %1109 = vmatpush1.bf16.xpose.msra.mxu0 0
    %1110 = vmatprep.subr.bf16.mxu0 0
    %1111 = vmatpush1.bf16.xpose.msra.mxu0 0
    %1112 = vmatprep.subr.bf16.mxu0 0
    %1113 = vmatpush1.bf16.xpose.msra.mxu0 0
    %1114 = vmatprep.subr.bf16.mxu0 0
    %1115 = vmatpush1.bf16.xpose.msra.mxu0 0
    %1116 = vmatprep.subr.bf16.mxu0 0
    %1117 = vmatpush1.bf16.xpose.msra.mxu0 0
    %1118 = vmatprep.subr.bf16.mxu0 0
    %1119 = vmatpush1.bf16.xpose.msra.mxu0 0
    %1120 = vmatprep.subr.bf16.mxu0 0
    %1121 = vmatpush1.bf16.xpose.msra.mxu0 0
    %1122 = vmatprep.subr.bf16.mxu0 0
    %1123 = vmatpush1.bf16.xpose.msra.mxu0 0
    %1124 = vmatprep.subr.bf16.mxu0 0
    %1125 = vmatpush1.bf16.xpose.msra.mxu0 0
    %1126 = vmatprep.subr.bf16.mxu0 0
    %1127 = vmatpush1.bf16.xpose.msra.mxu0 0
    %1128 = vmatprep.subr.bf16.mxu0 0
    %1129 = vmatpush1.bf16.xpose.msra.mxu0 0
    %1130 = vmatprep.subr.bf16.mxu0 0
    %1131 = vmatpush1.bf16.xpose.msra.mxu0 0
    %1132 = vmatprep.subr.bf16.mxu0 0
    %1133 = vmatpush1.bf16.xpose.msra.mxu0 0
    %1134 = vmatprep.mubr.bf16.mxu0 0
    %1135 = vmatmul.mubr.bf16.gmra.mrb[0].mxu0 %v1097
    %v1136 = vpop.f32.mrb[0].mxu0
    %v1137 = vadd.f32 0.0, %v1136
    %v1138 = vpop.f32.mrb[0].mxu0
    %v1139 = vpop.f32.mrb[0].mxu0
    %v1140 = vpop.f32.mrb[0].mxu0
    %1141 = vdwg.mxu0
    %1143 = vrot.lane.b32.xlu0 %v1090, 96
    %v1144 = vpop.permute.xlu0 %1143
    %v1146 = vsel %vm216, %v1090, 0
    %v1149 = vsel %vm216, %v1144, 0
    %1151 = vmatprep.subr.bf16.mxu0 0
    %1152 = vmatpush1.bf16.xpose.msra.mxu0 %v1149
    %1153 = vmatprep.subr.bf16.mxu0 0
    %1154 = vmatpush1.bf16.xpose.msra.mxu0 0
    %1155 = vmatprep.subr.bf16.mxu0 0
    %1156 = vmatpush1.bf16.xpose.msra.mxu0 0
    %1157 = vmatprep.subr.bf16.mxu0 0
    %1158 = vmatpush1.bf16.xpose.msra.mxu0 0
    %1159 = vmatprep.subr.bf16.mxu0 0
    %1160 = vmatpush1.bf16.xpose.msra.mxu0 0
    %1161 = vmatprep.subr.bf16.mxu0 0
    %1162 = vmatpush1.bf16.xpose.msra.mxu0 0
    %1163 = vmatprep.subr.bf16.mxu0 0
    %1164 = vmatpush1.bf16.xpose.msra.mxu0 0
    %1165 = vmatprep.subr.bf16.mxu0 0
    %1166 = vmatpush1.bf16.xpose.msra.mxu0 0
    %1167 = vmatprep.subr.bf16.mxu0 0
    %1168 = vmatpush1.bf16.xpose.msra.mxu0 0
    %1169 = vmatprep.subr.bf16.mxu0 0
    %1170 = vmatpush1.bf16.xpose.msra.mxu0 0
    %1171 = vmatprep.subr.bf16.mxu0 0
    %1172 = vmatpush1.bf16.xpose.msra.mxu0 0
    %1173 = vmatprep.subr.bf16.mxu0 0
    %1174 = vmatpush1.bf16.xpose.msra.mxu0 0
    %1175 = vmatprep.subr.bf16.mxu0 0
    %1176 = vmatpush1.bf16.xpose.msra.mxu0 0
    %1177 = vmatprep.subr.bf16.mxu0 0
    %1178 = vmatpush1.bf16.xpose.msra.mxu0 0
    %1179 = vmatprep.subr.bf16.mxu0 0
    %1180 = vmatpush1.bf16.xpose.msra.mxu0 0
    %1181 = vmatprep.subr.bf16.mxu0 0
    %1182 = vmatpush1.bf16.xpose.msra.mxu0 0
    %1183 = vmatprep.mubr.bf16.mxu0 0
    %1184 = vmatmul.mubr.bf16.gmra.mrb[0].mxu0 %v1146
    %v1185 = vpop.f32.mrb[0].mxu0
    %v1186 = vadd.f32 0.0, %v1185
    %v1187 = vpop.f32.mrb[0].mxu0
    %v1188 = vpop.f32.mrb[0].mxu0
    %v1189 = vpop.f32.mrb[0].mxu0
    %1190 = vdwg.mxu0
    %1192 = vrot.lane.b32.xlu0 %v1091, 96
    %v1193 = vpop.permute.xlu0 %1192
    %v1195 = vsel %vm216, %v1091, 0
    %v1198 = vsel %vm216, %v1193, 0
    %1200 = vmatprep.subr.bf16.mxu0 0
    %1201 = vmatpush1.bf16.xpose.msra.mxu0 %v1198
    %1202 = vmatprep.subr.bf16.mxu0 0
    %1203 = vmatpush1.bf16.xpose.msra.mxu0 0
    %1204 = vmatprep.subr.bf16.mxu0 0
    %1205 = vmatpush1.bf16.xpose.msra.mxu0 0
    %1206 = vmatprep.subr.bf16.mxu0 0
    %1207 = vmatpush1.bf16.xpose.msra.mxu0 0
    %1208 = vmatprep.subr.bf16.mxu0 0
    %1209 = vmatpush1.bf16.xpose.msra.mxu0 0
    %1210 = vmatprep.subr.bf16.mxu0 0
    %1211 = vmatpush1.bf16.xpose.msra.mxu0 0
    %1212 = vmatprep.subr.bf16.mxu0 0
    %1213 = vmatpush1.bf16.xpose.msra.mxu0 0
    %1214 = vmatprep.subr.bf16.mxu0 0
    %1215 = vmatpush1.bf16.xpose.msra.mxu0 0
    %1216 = vmatprep.subr.bf16.mxu0 0
    %1217 = vmatpush1.bf16.xpose.msra.mxu0 0
    %1218 = vmatprep.subr.bf16.mxu0 0
    %1219 = vmatpush1.bf16.xpose.msra.mxu0 0
    %1220 = vmatprep.subr.bf16.mxu0 0
    %1221 = vmatpush1.bf16.xpose.msra.mxu0 0
    %1222 = vmatprep.subr.bf16.mxu0 0
    %1223 = vmatpush1.bf16.xpose.msra.mxu0 0
    %1224 = vmatprep.subr.bf16.mxu0 0
    %1225 = vmatpush1.bf16.xpose.msra.mxu0 0
    %1226 = vmatprep.subr.bf16.mxu0 0
    %1227 = vmatpush1.bf16.xpose.msra.mxu0 0
    %1228 = vmatprep.subr.bf16.mxu0 0
    %1229 = vmatpush1.bf16.xpose.msra.mxu0 0
    %1230 = vmatprep.subr.bf16.mxu0 0
    %1231 = vmatpush1.bf16.xpose.msra.mxu0 0
    %1232 = vmatprep.mubr.bf16.mxu0 0
    %1233 = vmatmul.mubr.bf16.gmra.mrb[0].mxu0 %v1195
    %v1234 = vpop.f32.mrb[0].mxu0
    %v1235 = vadd.f32 0.0, %v1234
    %v1236 = vpop.f32.mrb[0].mxu0
    %v1237 = vpop.f32.mrb[0].mxu0
    %v1238 = vpop.f32.mrb[0].mxu0
    %1239 = vdwg.mxu0
    %1241 = vrot.lane.b32.xlu0 %v1092, 96
    %v1242 = vpop.permute.xlu0 %1241
    %v1244 = vsel %vm216, %v1092, 0
    %v1247 = vsel %vm216, %v1242, 0
    %1249 = vmatprep.subr.bf16.mxu0 0
    %1250 = vmatpush1.bf16.xpose.msra.mxu0 %v1247
    %1251 = vmatprep.subr.bf16.mxu0 0
    %1252 = vmatpush1.bf16.xpose.msra.mxu0 0
    %1253 = vmatprep.subr.bf16.mxu0 0
    %1254 = vmatpush1.bf16.xpose.msra.mxu0 0
    %1255 = vmatprep.subr.bf16.mxu0 0
    %1256 = vmatpush1.bf16.xpose.msra.mxu0 0
    %1257 = vmatprep.subr.bf16.mxu0 0
    %1258 = vmatpush1.bf16.xpose.msra.mxu0 0
    %1259 = vmatprep.subr.bf16.mxu0 0
    %1260 = vmatpush1.bf16.xpose.msra.mxu0 0
    %1261 = vmatprep.subr.bf16.mxu0 0
    %1262 = vmatpush1.bf16.xpose.msra.mxu0 0
    %1263 = vmatprep.subr.bf16.mxu0 0
    %1264 = vmatpush1.bf16.xpose.msra.mxu0 0
    %1265 = vmatprep.subr.bf16.mxu0 0
    %1266 = vmatpush1.bf16.xpose.msra.mxu0 0
    %1267 = vmatprep.subr.bf16.mxu0 0
    %1268 = vmatpush1.bf16.xpose.msra.mxu0 0
    %1269 = vmatprep.subr.bf16.mxu0 0
    %1270 = vmatpush1.bf16.xpose.msra.mxu0 0
    %1271 = vmatprep.subr.bf16.mxu0 0
    %1272 = vmatpush1.bf16.xpose.msra.mxu0 0
    %1273 = vmatprep.subr.bf16.mxu0 0
    %1274 = vmatpush1.bf16.xpose.msra.mxu0 0
    %1275 = vmatprep.subr.bf16.mxu0 0
    %1276 = vmatpush1.bf16.xpose.msra.mxu0 0
    %1277 = vmatprep.subr.bf16.mxu0 0
    %1278 = vmatpush1.bf16.xpose.msra.mxu0 0
    %1279 = vmatprep.subr.bf16.mxu0 0
    %1280 = vmatpush1.bf16.xpose.msra.mxu0 0
    %1281 = vmatprep.mubr.bf16.mxu0 0
    %1282 = vmatmul.mubr.bf16.gmra.mrb[0].mxu0 %v1244
    %v1283 = vpop.f32.mrb[0].mxu0
    %v1284 = vadd.f32 0.0, %v1283
    %v1285 = vpop.f32.mrb[0].mxu0
    %v1286 = vpop.f32.mrb[0].mxu0
    %v1287 = vpop.f32.mrb[0].mxu0
    %1288 = vdwg.mxu0
    %v1289 = vmul.f32 %v1137, 0.25
    %v1290 = vmul.f32 %v1186, 0.25
    %v1291 = vmul.f32 %v1235, 0.25
    %v1292 = vmul.f32 %v1284, 0.25
    %v1293 = vadd.f32 %v1289, %v417
    %v1294 = vadd.f32 %v1290, %v421
    %v1295 = vadd.f32 %v1291, %v417
    %v1296 = vadd.f32 %v1292, %v421
    %v1297 = vsel %vm428, %v1293, -inf
    %1298 = vmax.xlane.f32.xlu0 %v1297
    %v1299 = vpop.xlane.xlu0 %1298
    %v1300 = vsel %vm428, %v1294, -inf
    %1301 = vmax.xlane.f32.xlu0 %v1300
    %v1302 = vpop.xlane.xlu0 %1301
    %v1303 = vsel %vm428, %v1295, -inf
    %1304 = vmax.xlane.f32.xlu0 %v1303
    %v1305 = vpop.xlane.xlu0 %1304
    %v1306 = vsel %vm428, %v1296, -inf
    %1307 = vmax.xlane.f32.xlu0 %v1306
    %v1308 = vpop.xlane.xlu0 %1307
    %v1309 = vsub.f32 %v1293, %v1299
    %v1310 = vsub.f32 %v1294, %v1302
    %v1311 = vsub.f32 %v1295, %v1305
    %v1312 = vsub.f32 %v1296, %v1308
    %v1313 = vmul.f32 %v1309, 1.442695
    %v1314 = vpow.pop %v1313
    %v1315 = vmul.f32 %v1310, 1.442695
    %v1316 = vpow.pop %v1315
    %v1317 = vmul.f32 %v1311, 1.442695
    %v1318 = vpow.pop %v1317
    %v1319 = vmul.f32 %v1312, 1.442695
    %v1320 = vpow.pop %v1319
    %v1321 = vsel %vm428, %v1314, 0.0
    %1322 = vadd.xlane.f32.xlu0 %v1321
    %v1323 = vpop.xlane.xlu0 %1322
    %v1324 = vsel %vm428, %v1316, 0.0
    %1325 = vadd.xlane.f32.xlu0 %v1324
    %v1326 = vpop.xlane.xlu0 %1325
    %v1327 = vsel %vm428, %v1318, 0.0
    %1328 = vadd.xlane.f32.xlu0 %v1327
    %v1329 = vpop.xlane.xlu0 %1328
    %v1330 = vsel %vm428, %v1320, 0.0
    %1331 = vadd.xlane.f32.xlu0 %v1330
    %v1332 = vpop.xlane.xlu0 %1331
    %v1333 = vrcp.pop %v1323
    %v1334 = vrcp.pop %v1326
    %v1335 = vrcp.pop %v1329
    %v1336 = vrcp.pop %v1332
    %v1337 = vmul.f32 %v1314, %v1333
    %v1338 = vmul.f32 %v1316, %v1334
    %v1339 = vmul.f32 %v1318, %v1335
    %v1340 = vmul.f32 %v1320, %v1336
    %v1341 = vpack.c.bf16 %v1337, %v1337
    %v1342 = vpack.c.bf16 %v1338, %v1338
    %v1343 = vpack.c.bf16 %v1339, %v1339
    %v1344 = vpack.c.bf16 %v1340, %v1340
    %1345 = vrot.lane.b32.xlu0 %v1089, 64
    %v1346 = vpop.permute.xlu0 %1345
    %v1348 = vsel %vm428, %v1341, 0
    %v1351 = vsel %vm482, %v1346, 0
    %1353 = vmatprep.subr.bf16.mxu0 0
    %1354 = vmatpush1.bf16.msra.mxu0 %v1351
    %1355 = vmatprep.subr.bf16.mxu0 0
    %1356 = vmatpush1.bf16.msra.mxu0 0
    %1357 = vmatprep.subr.bf16.mxu0 0
    %1358 = vmatpush1.bf16.msra.mxu0 0
    %1359 = vmatprep.subr.bf16.mxu0 0
    %1360 = vmatpush1.bf16.msra.mxu0 0
    %1361 = vmatprep.subr.bf16.mxu0 0
    %1362 = vmatpush1.bf16.msra.mxu0 0
    %1363 = vmatprep.subr.bf16.mxu0 0
    %1364 = vmatpush1.bf16.msra.mxu0 0
    %1365 = vmatprep.subr.bf16.mxu0 0
    %1366 = vmatpush1.bf16.msra.mxu0 0
    %1367 = vmatprep.subr.bf16.mxu0 0
    %1368 = vmatpush1.bf16.msra.mxu0 0
    %1369 = vmatprep.subr.bf16.mxu0 0
    %1370 = vmatpush1.bf16.msra.mxu0 0
    %1371 = vmatprep.subr.bf16.mxu0 0
    %1372 = vmatpush1.bf16.msra.mxu0 0
    %1373 = vmatprep.subr.bf16.mxu0 0
    %1374 = vmatpush1.bf16.msra.mxu0 0
    %1375 = vmatprep.subr.bf16.mxu0 0
    %1376 = vmatpush1.bf16.msra.mxu0 0
    %1377 = vmatprep.subr.bf16.mxu0 0
    %1378 = vmatpush1.bf16.msra.mxu0 0
    %1379 = vmatprep.subr.bf16.mxu0 0
    %1380 = vmatpush1.bf16.msra.mxu0 0
    %1381 = vmatprep.subr.bf16.mxu0 0
    %1382 = vmatpush1.bf16.msra.mxu0 0
    %1383 = vmatprep.subr.bf16.mxu0 0
    %1384 = vmatpush1.bf16.msra.mxu0 0
    %1385 = vmatprep.mubr.bf16.mxu0 0
    %1386 = vmatmul.mubr.bf16.gmra.mrb[0].mxu0 %v1348
    %v1387 = vpop.f32.mrb[0].mxu0
    %v1388 = vadd.f32 0.0, %v1387
    %v1389 = vpop.f32.mrb[0].mxu0
    %v1390 = vpop.f32.mrb[0].mxu0
    %v1391 = vpop.f32.mrb[0].mxu0
    %1392 = vdwg.mxu0
    %1393 = vrot.lane.b32.xlu0 %v1090, 64
    %v1394 = vpop.permute.xlu0 %1393
    %v1396 = vsel %vm428, %v1342, 0
    %v1399 = vsel %vm482, %v1394, 0
    %1401 = vmatprep.subr.bf16.mxu0 0
    %1402 = vmatpush1.bf16.msra.mxu0 %v1399
    %1403 = vmatprep.subr.bf16.mxu0 0
    %1404 = vmatpush1.bf16.msra.mxu0 0
    %1405 = vmatprep.subr.bf16.mxu0 0
    %1406 = vmatpush1.bf16.msra.mxu0 0
    %1407 = vmatprep.subr.bf16.mxu0 0
    %1408 = vmatpush1.bf16.msra.mxu0 0
    %1409 = vmatprep.subr.bf16.mxu0 0
    %1410 = vmatpush1.bf16.msra.mxu0 0
    %1411 = vmatprep.subr.bf16.mxu0 0
    %1412 = vmatpush1.bf16.msra.mxu0 0
    %1413 = vmatprep.subr.bf16.mxu0 0
    %1414 = vmatpush1.bf16.msra.mxu0 0
    %1415 = vmatprep.subr.bf16.mxu0 0
    %1416 = vmatpush1.bf16.msra.mxu0 0
    %1417 = vmatprep.subr.bf16.mxu0 0
    %1418 = vmatpush1.bf16.msra.mxu0 0
    %1419 = vmatprep.subr.bf16.mxu0 0
    %1420 = vmatpush1.bf16.msra.mxu0 0
    %1421 = vmatprep.subr.bf16.mxu0 0
    %1422 = vmatpush1.bf16.msra.mxu0 0
    %1423 = vmatprep.subr.bf16.mxu0 0
    %1424 = vmatpush1.bf16.msra.mxu0 0
    %1425 = vmatprep.subr.bf16.mxu0 0
    %1426 = vmatpush1.bf16.msra.mxu0 0
    %1427 = vmatprep.subr.bf16.mxu0 0
    %1428 = vmatpush1.bf16.msra.mxu0 0
    %1429 = vmatprep.subr.bf16.mxu0 0
    %1430 = vmatpush1.bf16.msra.mxu0 0
    %1431 = vmatprep.subr.bf16.mxu0 0
    %1432 = vmatpush1.bf16.msra.mxu0 0
    %1433 = vmatprep.mubr.bf16.mxu0 0
    %1434 = vmatmul.mubr.bf16.gmra.mrb[0].mxu0 %v1396
    %v1435 = vpop.f32.mrb[0].mxu0
    %v1436 = vadd.f32 0.0, %v1435
    %v1437 = vpop.f32.mrb[0].mxu0
    %v1438 = vpop.f32.mrb[0].mxu0
    %v1439 = vpop.f32.mrb[0].mxu0
    %1440 = vdwg.mxu0
    %1441 = vrot.lane.b32.xlu0 %v1091, 64
    %v1442 = vpop.permute.xlu0 %1441
    %v1444 = vsel %vm428, %v1343, 0
    %v1447 = vsel %vm482, %v1442, 0
    %1449 = vmatprep.subr.bf16.mxu0 0
    %1450 = vmatpush1.bf16.msra.mxu0 %v1447
    %1451 = vmatprep.subr.bf16.mxu0 0
    %1452 = vmatpush1.bf16.msra.mxu0 0
    %1453 = vmatprep.subr.bf16.mxu0 0
    %1454 = vmatpush1.bf16.msra.mxu0 0
    %1455 = vmatprep.subr.bf16.mxu0 0
    %1456 = vmatpush1.bf16.msra.mxu0 0
    %1457 = vmatprep.subr.bf16.mxu0 0
    %1458 = vmatpush1.bf16.msra.mxu0 0
    %1459 = vmatprep.subr.bf16.mxu0 0
    %1460 = vmatpush1.bf16.msra.mxu0 0
    %1461 = vmatprep.subr.bf16.mxu0 0
    %1462 = vmatpush1.bf16.msra.mxu0 0
    %1463 = vmatprep.subr.bf16.mxu0 0
    %1464 = vmatpush1.bf16.msra.mxu0 0
    %1465 = vmatprep.subr.bf16.mxu0 0
    %1466 = vmatpush1.bf16.msra.mxu0 0
    %1467 = vmatprep.subr.bf16.mxu0 0
    %1468 = vmatpush1.bf16.msra.mxu0 0
    %1469 = vmatprep.subr.bf16.mxu0 0
    %1470 = vmatpush1.bf16.msra.mxu0 0
    %1471 = vmatprep.subr.bf16.mxu0 0
    %1472 = vmatpush1.bf16.msra.mxu0 0
    %1473 = vmatprep.subr.bf16.mxu0 0
    %1474 = vmatpush1.bf16.msra.mxu0 0
    %1475 = vmatprep.subr.bf16.mxu0 0
    %1476 = vmatpush1.bf16.msra.mxu0 0
    %1477 = vmatprep.subr.bf16.mxu0 0
    %1478 = vmatpush1.bf16.msra.mxu0 0
    %1479 = vmatprep.subr.bf16.mxu0 0
    %1480 = vmatpush1.bf16.msra.mxu0 0
    %1481 = vmatprep.mubr.bf16.mxu0 0
    %1482 = vmatmul.mubr.bf16.gmra.mrb[0].mxu0 %v1444
    %v1483 = vpop.f32.mrb[0].mxu0
    %v1484 = vadd.f32 0.0, %v1483
    %v1485 = vpop.f32.mrb[0].mxu0
    %v1486 = vpop.f32.mrb[0].mxu0
    %v1487 = vpop.f32.mrb[0].mxu0
    %1488 = vdwg.mxu0
    %1489 = vrot.lane.b32.xlu0 %v1092, 64
    %v1490 = vpop.permute.xlu0 %1489
    %v1492 = vsel %vm428, %v1344, 0
    %v1495 = vsel %vm482, %v1490, 0
    %1497 = vmatprep.subr.bf16.mxu0 0
    %1498 = vmatpush1.bf16.msra.mxu0 %v1495
    %1499 = vmatprep.subr.bf16.mxu0 0
    %1500 = vmatpush1.bf16.msra.mxu0 0
    %1501 = vmatprep.subr.bf16.mxu0 0
    %1502 = vmatpush1.bf16.msra.mxu0 0
    %1503 = vmatprep.subr.bf16.mxu0 0
    %1504 = vmatpush1.bf16.msra.mxu0 0
    %1505 = vmatprep.subr.bf16.mxu0 0
    %1506 = vmatpush1.bf16.msra.mxu0 0
    %1507 = vmatprep.subr.bf16.mxu0 0
    %1508 = vmatpush1.bf16.msra.mxu0 0
    %1509 = vmatprep.subr.bf16.mxu0 0
    %1510 = vmatpush1.bf16.msra.mxu0 0
    %1511 = vmatprep.subr.bf16.mxu0 0
    %1512 = vmatpush1.bf16.msra.mxu0 0
    %1513 = vmatprep.subr.bf16.mxu0 0
    %1514 = vmatpush1.bf16.msra.mxu0 0
    %1515 = vmatprep.subr.bf16.mxu0 0
    %1516 = vmatpush1.bf16.msra.mxu0 0
    %1517 = vmatprep.subr.bf16.mxu0 0
    %1518 = vmatpush1.bf16.msra.mxu0 0
    %1519 = vmatprep.subr.bf16.mxu0 0
    %1520 = vmatpush1.bf16.msra.mxu0 0
    %1521 = vmatprep.subr.bf16.mxu0 0
    %1522 = vmatpush1.bf16.msra.mxu0 0
    %1523 = vmatprep.subr.bf16.mxu0 0
    %1524 = vmatpush1.bf16.msra.mxu0 0
    %1525 = vmatprep.subr.bf16.mxu0 0
    %1526 = vmatpush1.bf16.msra.mxu0 0
    %1527 = vmatprep.subr.bf16.mxu0 0
    %1528 = vmatpush1.bf16.msra.mxu0 0
    %1529 = vmatprep.mubr.bf16.mxu0 0
    %1530 = vmatmul.mubr.bf16.gmra.mrb[0].mxu0 %v1492
    %v1531 = vpop.f32.mrb[0].mxu0
    %v1532 = vadd.f32 0.0, %v1531
    %v1533 = vpop.f32.mrb[0].mxu0
    %v1534 = vpop.f32.mrb[0].mxu0
    %v1535 = vpop.f32.mrb[0].mxu0
    %1536 = vdwg.mxu0
    %1539 = vrot.lane.b32.xlu0 %v1484, 16
    %v1540 = vpop.permute.xlu0 %1539
    %1541 = vrot.lane.b32.xlu0 %v1532, 16
    %v1542 = vpop.permute.xlu0 %1541
    %v1545 = vsel %vm216, %v1388, %v1540
    %v1546 = vsel %vm216, %v1436, %v1542
    %v1547 = vpack.c.bf16 %v1546, %v1545
    %s1548 = scalar_lea.vmem %s6, 16
    %v1549 = vld [vmem:[%s1548] sm:$0xf]
    %v1550 = vld [vmem:[%s1548 + $0x4] sm:$0xf]
    %v1551 = vld [vmem:[%s1548 + $0x8] sm:$0xf]
    %v1552 = vld [vmem:[%s1548 + $0xc] sm:$0xf]
    %s1553 = scalar_lea.vmem %s7, 1
    %v1554 = vld [vmem:[%s1553] sm:$0x1]
    %v1556 = vlaneseq
    %v1557 = vshrl.u32 %v1556, 7
    %v1558 = vsub.s32 0, %v1557
    %v1559 = vrot.slane %v1554, %v1558
    %v1565 = vunpack.c.l.b16 %v1549
    %v1566 = vunpack.c.l.b16 %v1550
    %v1567 = vunpack.c.l.b16 %v1551
    %v1568 = vunpack.c.l.b16 %v1552
    %v1569 = vpack.c.b16 %v1566, %v1565
    %v1570 = vpack.c.b16 %v1568, %v1567
    %v1574 = vsel %vm89, %v1547, 0
    %1576 = vmatprep.subr.bf16.mxu0 0
    %1577 = vmatpush1.bf16.msra.mxu0 %v1569
    %1578 = vmatprep.subr.bf16.mxu0 0
    %1579 = vmatpush1.bf16.msra.mxu0 %v1570
    %1580 = vmatprep.subr.bf16.mxu0 0
    %1581 = vmatpush1.bf16.msra.mxu0 0
    %1582 = vmatprep.subr.bf16.mxu0 0
    %1583 = vmatpush1.bf16.msra.mxu0 0
    %1584 = vmatprep.subr.bf16.mxu0 0
    %1585 = vmatpush1.bf16.msra.mxu0 0
    %1586 = vmatprep.subr.bf16.mxu0 0
    %1587 = vmatpush1.bf16.msra.mxu0 0
    %1588 = vmatprep.subr.bf16.mxu0 0
    %1589 = vmatpush1.bf16.msra.mxu0 0
    %1590 = vmatprep.subr.bf16.mxu0 0
    %1591 = vmatpush1.bf16.msra.mxu0 0
    %1592 = vmatprep.subr.bf16.mxu0 0
    %1593 = vmatpush1.bf16.msra.mxu0 0
    %1594 = vmatprep.subr.bf16.mxu0 0
    %1595 = vmatpush1.bf16.msra.mxu0 0
    %1596 = vmatprep.subr.bf16.mxu0 0
    %1597 = vmatpush1.bf16.msra.mxu0 0
    %1598 = vmatprep.subr.bf16.mxu0 0
    %1599 = vmatpush1.bf16.msra.mxu0 0
    %1600 = vmatprep.subr.bf16.mxu0 0
    %1601 = vmatpush1.bf16.msra.mxu0 0
    %1602 = vmatprep.subr.bf16.mxu0 0
    %1603 = vmatpush1.bf16.msra.mxu0 0
    %1604 = vmatprep.subr.bf16.mxu0 0
    %1605 = vmatpush1.bf16.msra.mxu0 0
    %1606 = vmatprep.subr.bf16.mxu0 0
    %1607 = vmatpush1.bf16.msra.mxu0 0
    %1608 = vmatprep.mubr.bf16.mxu0 0
    %1609 = vmatmul.mubr.bf16.gmra.mrb[0].mxu0 %v1574
    %v1610 = vpop.f32.mrb[0].mxu0
    %v1611 = vadd.f32 %v1559, %v1610
    %v1612 = vpop.f32.mrb[0].mxu0
    %v1613 = vpop.f32.mrb[0].mxu0
    %v1614 = vadd.f32 %v1559, %v1613
    %v1615 = vpop.f32.mrb[0].mxu0
    %1616 = vdwg.mxu0
    %v1617 = vadd.f32 %v1611, %v1009
    %v1618 = vadd.f32 %v1614, %v1010
    %s1619 = scalar_lea.vmem %s8, 1
    %v1620 = vld [vmem:[%s1619] sm:$0x1]
    %s1621 = scalar_lea.vmem %s9, 1
    %v1622 = vld [vmem:[%s1621] sm:$0x1]
    %v1623 = vsel %vm89, %v1617, 0.0
    %1624 = vadd.xlane.f32.xlu0 %v1623
    %v1625 = vpop.xlane.xlu0 %1624
    %v1626 = vsel %vm89, %v1618, 0.0
    %1627 = vadd.xlane.f32.xlu0 %v1626
    %v1628 = vpop.xlane.xlu0 %1627
    %v1629 = vmul.f32 %v1625, %v96
    %v1630 = vmul.f32 %v1628, %v96
    %v1631 = vsub.f32 %v1617, %v1629
    %v1632 = vsub.f32 %v1618, %v1630
    %v1633 = vmul.f32 %v1631, %v1631
    %v1634 = vmul.f32 %v1632, %v1632
    %v1635 = vsel %vm89, %v1633, 0.0
    %1636 = vadd.xlane.f32.xlu0 %v1635
    %v1637 = vpop.xlane.xlu0 %1636
    %v1638 = vsel %vm89, %v1634, 0.0
    %1639 = vadd.xlane.f32.xlu0 %v1638
    %v1640 = vpop.xlane.xlu0 %1639
    %v1641 = vmul.f32 %v1637, %v96
    %v1642 = vmul.f32 %v1640, %v96
    %v1643 = vadd.f32 %v1641, 1e-05
    %v1644 = vadd.f32 %v1642, 1e-05
    %v1645 = vrsqrt.pop %v1643
    %v1646 = vrsqrt.pop %v1644
    %v1647 = vmul.f32 %v1631, %v1645
    %v1648 = vmul.f32 %v1632, %v1646
    %v1650 = vlaneseq
    %v1651 = vshrl.u32 %v1650, 7
    %v1652 = vsub.s32 0, %v1651
    %v1653 = vrot.slane %v1620, %v1652
    %v1655 = vmul.f32 %v1647, %v1653
    %v1656 = vmul.f32 %v1648, %v1653
    %v1658 = vlaneseq
    %v1659 = vshrl.u32 %v1658, 7
    %v1660 = vsub.s32 0, %v1659
    %v1661 = vrot.slane %v1622, %v1660
    %v1663 = vadd.f32 %v1655, %v1661
    %v1664 = vadd.f32 %v1656, %v1661
    %v1665 = vpack.c.bf16 %v1664, %v1663
    %s1666 = scalar_lea.vmem %s10, 16
    %v1667 = vld [vmem:[%s1666] sm:$0xf]
    %v1668 = vld [vmem:[%s1666 + $0x4] sm:$0xf]
    %v1669 = vld [vmem:[%s1666 + $0x8] sm:$0xf]
    %v1670 = vld [vmem:[%s1666 + $0xc] sm:$0xf]
    %s1671 = scalar_lea.vmem %s11, 1
    %v1672 = vld [vmem:[%s1671] sm:$0x1]
    %v1674 = vlaneseq
    %v1675 = vshrl.u32 %v1674, 7
    %v1676 = vsub.s32 0, %v1675
    %v1677 = vrot.slane %v1672, %v1676
    %v1683 = vunpack.c.l.b16 %v1667
    %v1684 = vunpack.c.l.b16 %v1668
    %v1685 = vunpack.c.l.b16 %v1669
    %v1686 = vunpack.c.l.b16 %v1670
    %v1687 = vpack.c.b16 %v1684, %v1683
    %v1688 = vpack.c.b16 %v1686, %v1685
    %v1692 = vsel %vm89, %v1665, 0
    %1694 = vmatprep.subr.bf16.mxu0 0
    %1695 = vmatpush1.bf16.msra.mxu0 %v1687
    %1696 = vmatprep.subr.bf16.mxu0 0
    %1697 = vmatpush1.bf16.msra.mxu0 %v1688
    %1698 = vmatprep.subr.bf16.mxu0 0
    %1699 = vmatpush1.bf16.msra.mxu0 0
    %1700 = vmatprep.subr.bf16.mxu0 0
    %1701 = vmatpush1.bf16.msra.mxu0 0
    %1702 = vmatprep.subr.bf16.mxu0 0
    %1703 = vmatpush1.bf16.msra.mxu0 0
    %1704 = vmatprep.subr.bf16.mxu0 0
    %1705 = vmatpush1.bf16.msra.mxu0 0
    %1706 = vmatprep.subr.bf16.mxu0 0
    %1707 = vmatpush1.bf16.msra.mxu0 0
    %1708 = vmatprep.subr.bf16.mxu0 0
    %1709 = vmatpush1.bf16.msra.mxu0 0
    %1710 = vmatprep.subr.bf16.mxu0 0
    %1711 = vmatpush1.bf16.msra.mxu0 0
    %1712 = vmatprep.subr.bf16.mxu0 0
    %1713 = vmatpush1.bf16.msra.mxu0 0
    %1714 = vmatprep.subr.bf16.mxu0 0
    %1715 = vmatpush1.bf16.msra.mxu0 0
    %1716 = vmatprep.subr.bf16.mxu0 0
    %1717 = vmatpush1.bf16.msra.mxu0 0
    %1718 = vmatprep.subr.bf16.mxu0 0
    %1719 = vmatpush1.bf16.msra.mxu0 0
    %1720 = vmatprep.subr.bf16.mxu0 0
    %1721 = vmatpush1.bf16.msra.mxu0 0
    %1722 = vmatprep.subr.bf16.mxu0 0
    %1723 = vmatpush1.bf16.msra.mxu0 0
    %1724 = vmatprep.subr.bf16.mxu0 0
    %1725 = vmatpush1.bf16.msra.mxu0 0
    %1726 = vmatprep.mubr.bf16.mxu0 0
    %1727 = vmatmul.mubr.bf16.gmra.mrb[0].mxu0 %v1692
    %v1728 = vpop.f32.mrb[0].mxu0
    %v1729 = vadd.f32 %v1677, %v1728
    %v1730 = vpop.f32.mrb[0].mxu0
    %v1731 = vpop.f32.mrb[0].mxu0
    %v1732 = vadd.f32 %v1677, %v1731
    %v1733 = vpop.f32.mrb[0].mxu0
    %1734 = vdwg.mxu0
    %v1735 = vmul.f32 %v1729, 0.5
    %v1736 = vmul.f32 %v1732, 0.5
    %v1737 = vmul.f32 %v1729, 0.044715
    %v1738 = vmul.f32 %v1732, 0.044715
    %v1739 = vmul.f32 %v1737, %v1729
    %v1740 = vmul.f32 %v1738, %v1732
    %v1741 = vmul.f32 %v1739, %v1729
    %v1742 = vmul.f32 %v1740, %v1732
    %v1743 = vadd.f32 %v1729, %v1741
    %v1744 = vadd.f32 %v1732, %v1742
    %v1745 = vmul.f32 %v1743, 0.7978846
    %v1746 = vmul.f32 %v1744, 0.7978846
    %v1747 = vtanh.pop %v1745
    %v1748 = vtanh.pop %v1746
    %v1749 = vadd.f32 %v1747, 1.0
    %v1750 = vadd.f32 %v1748, 1.0
    %v1751 = vmul.f32 %v1735, %v1749
    %v1752 = vmul.f32 %v1736, %v1750
    %v1753 = vpack.c.bf16 %v1752, %v1751
    %s1754 = scalar_lea.vmem %s12, 32
    %v1755 = vld [vmem:[%s1754] sm:$0xf]
    %v1756 = vld [vmem:[%s1754 + $0x4] sm:$0xf]
    %v1757 = vld [vmem:[%s1754 + $0x8] sm:$0xf]
    %v1758 = vld [vmem:[%s1754 + $0xc] sm:$0xf]
    %v1759 = vld [vmem:[%s1754 + $0x10] sm:$0xf]
    %v1760 = vld [vmem:[%s1754 + $0x14] sm:$0xf]
    %v1761 = vld [vmem:[%s1754 + $0x18] sm:$0xf]
    %v1762 = vld [vmem:[%s1754 + $0x1c] sm:$0xf]
    %s1763 = scalar_lea.vmem %s13, 1
    %v1764 = vld [vmem:[%s1763] sm:$0x1]
    %v1766 = vlaneseq
    %v1767 = vshrl.u32 %v1766, 7
    %v1768 = vsub.s32 0, %v1767
    %v1769 = vrot.slane %v1764, %v1768
    %v1779 = vunpack.c.l.b16 %v1755
    %v1780 = vunpack.c.l.b16 %v1756
    %v1781 = vunpack.c.l.b16 %v1757
    %v1782 = vunpack.c.l.b16 %v1758
    %v1783 = vunpack.c.l.b16 %v1759
    %v1784 = vunpack.c.l.b16 %v1760
    %v1785 = vunpack.c.l.b16 %v1761
    %v1786 = vunpack.c.l.b16 %v1762
    %v1787 = vpack.c.b16 %v1780, %v1779
    %v1788 = vpack.c.b16 %v1782, %v1781
    %v1789 = vpack.c.b16 %v1784, %v1783
    %v1790 = vpack.c.b16 %v1786, %v1785
    %v1796 = vsel %vm920, %v1753, 0
    %1798 = vmatprep.subr.bf16.mxu0 0
    %1799 = vmatpush1.bf16.msra.mxu0 %v1787
    %1800 = vmatprep.subr.bf16.mxu0 0
    %1801 = vmatpush1.bf16.msra.mxu0 %v1788
    %1802 = vmatprep.subr.bf16.mxu0 0
    %1803 = vmatpush1.bf16.msra.mxu0 %v1789
    %1804 = vmatprep.subr.bf16.mxu0 0
    %1805 = vmatpush1.bf16.msra.mxu0 %v1790
    %1806 = vmatprep.subr.bf16.mxu0 0
    %1807 = vmatpush1.bf16.msra.mxu0 0
    %1808 = vmatprep.subr.bf16.mxu0 0
    %1809 = vmatpush1.bf16.msra.mxu0 0
    %1810 = vmatprep.subr.bf16.mxu0 0
    %1811 = vmatpush1.bf16.msra.mxu0 0
    %1812 = vmatprep.subr.bf16.mxu0 0
    %1813 = vmatpush1.bf16.msra.mxu0 0
    %1814 = vmatprep.subr.bf16.mxu0 0
    %1815 = vmatpush1.bf16.msra.mxu0 0
    %1816 = vmatprep.subr.bf16.mxu0 0
    %1817 = vmatpush1.bf16.msra.mxu0 0
    %1818 = vmatprep.subr.bf16.mxu0 0
    %1819 = vmatpush1.bf16.msra.mxu0 0
    %1820 = vmatprep.subr.bf16.mxu0 0
    %1821 = vmatpush1.bf16.msra.mxu0 0
    %1822 = vmatprep.subr.bf16.mxu0 0
    %1823 = vmatpush1.bf16.msra.mxu0 0
    %1824 = vmatprep.subr.bf16.mxu0 0
    %1825 = vmatpush1.bf16.msra.mxu0 0
    %1826 = vmatprep.subr.bf16.mxu0 0
    %1827 = vmatpush1.bf16.msra.mxu0 0
    %1828 = vmatprep.subr.bf16.mxu0 0
    %1829 = vmatpush1.bf16.msra.mxu0 0
    %1830 = vmatprep.mubr.bf16.mxu0 0
    %1831 = vmatmul.mubr.bf16.gmra.mrb[0].mxu0 %v1796
    %v1832 = vpop.f32.mrb[0].mxu0
    %v1833 = vadd.f32 %v1769, %v1832
    %v1834 = vpop.f32.mrb[0].mxu0
    %v1835 = vpop.f32.mrb[0].mxu0
    %v1836 = vadd.f32 %v1769, %v1835
    %v1837 = vpop.f32.mrb[0].mxu0
    %1838 = vdwg.mxu0
    %v1839 = vadd.f32 %v1833, %v1663
    %v1840 = vadd.f32 %v1836, %v1664
    %s1841 = scalar_lea.vmem %s14, 1
    %v1842 = vld [vmem:[%s1841] sm:$0x1]
    %s1843 = scalar_lea.vmem %s15, 1
    %v1844 = vld [vmem:[%s1843] sm:$0x1]
    %v1845 = vsel %vm89, %v1839, 0.0
    %1846 = vadd.xlane.f32.xlu0 %v1845
    %v1847 = vpop.xlane.xlu0 %1846
    %v1848 = vsel %vm89, %v1840, 0.0
    %1849 = vadd.xlane.f32.xlu0 %v1848
    %v1850 = vpop.xlane.xlu0 %1849
    %v1851 = vmul.f32 %v1847, %v96
    %v1852 = vmul.f32 %v1850, %v96
    %v1853 = vsub.f32 %v1839, %v1851
    %v1854 = vsub.f32 %v1840, %v1852
    %v1855 = vmul.f32 %v1853, %v1853
    %v1856 = vmul.f32 %v1854, %v1854
    %v1857 = vsel %vm89, %v1855, 0.0
    %1858 = vadd.xlane.f32.xlu0 %v1857
    %v1859 = vpop.xlane.xlu0 %1858
    %v1860 = vsel %vm89, %v1856, 0.0
    %1861 = vadd.xlane.f32.xlu0 %v1860
    %v1862 = vpop.xlane.xlu0 %1861
    %v1863 = vmul.f32 %v1859, %v96
    %v1864 = vmul.f32 %v1862, %v96
    %v1865 = vadd.f32 %v1863, 1e-05
    %v1866 = vadd.f32 %v1864, 1e-05
    %v1867 = vrsqrt.pop %v1865
    %v1868 = vrsqrt.pop %v1866
    %v1869 = vmul.f32 %v1853, %v1867
    %v1870 = vmul.f32 %v1854, %v1868
    %v1872 = vlaneseq
    %v1873 = vshrl.u32 %v1872, 7
    %v1874 = vsub.s32 0, %v1873
    %v1875 = vrot.slane %v1842, %v1874
    %v1877 = vmul.f32 %v1869, %v1875
    %v1878 = vmul.f32 %v1870, %v1875
    %v1880 = vlaneseq
    %v1881 = vshrl.u32 %v1880, 7
    %v1882 = vsub.s32 0, %v1881
    %v1883 = vrot.slane %v1844, %v1882
    %v1885 = vadd.f32 %v1877, %v1883
    %v1886 = vadd.f32 %v1878, %v1883
    %v1887 = vld [vmem:[%s16] sm:$0xff]
    %v1888 = vld [vmem:[%s16 + $0x8] sm:$0xff]
    %v1889 = vld [vmem:[%s16 + $0x10] sm:$0xff]
    %v1890 = vld [vmem:[%s16 + $0x18] sm:$0xff]
    %v1891 = vld [vmem:[%s17] sm:$0x1]
    %v1893 = vlaneseq
    %v1894 = vshrl.u32 %v1893, 7
    %v1895 = vsub.s32 0, %v1894
    %v1896 = vrot.slane %v1891, %v1895
    %v1900 = vrot.slane %v1886, 7
    %vm1901 = vcmask 1041409
    %v1902 = vsel %vm1901, %v1900, %v1885
    %v1903 = vsel %vm89, %v1902, 0
    %1905 = vmatprep.subr.mxu0 0.0
    %1906 = vmatpush1.msra.mxu0 %v1887
    %1907 = vmatprep.subr.mxu0 0.0
    %1908 = vmatpush1.msra.mxu0 %v1888
    %1909 = vmatprep.subr.mxu0 0.0
    %1910 = vmatpush1.msra.mxu0 %v1889
    %1911 = vmatprep.subr.mxu0 0.0
    %1912 = vmatpush1.msra.mxu0 %v1890
    %1913 = vmatprep.subr.mxu0 0.0
    %1914 = vmatpush1.msra.mxu0 0.0
    %1915 = vmatprep.subr.mxu0 0.0
    %1916 = vmatpush1.msra.mxu0 0.0
    %1917 = vmatprep.subr.mxu0 0.0
    %1918 = vmatpush1.msra.mxu0 0.0
    %1919 = vmatprep.subr.mxu0 0.0
    %1920 = vmatpush1.msra.mxu0 0.0
    %1921 = vmatprep.subr.mxu0 0.0
    %1922 = vmatpush1.msra.mxu0 0.0
    %1923 = vmatprep.subr.mxu0 0.0
    %1924 = vmatpush1.msra.mxu0 0.0
    %1925 = vmatprep.subr.mxu0 0.0
    %1926 = vmatpush1.msra.mxu0 0.0
    %1927 = vmatprep.subr.mxu0 0.0
    %1928 = vmatpush1.msra.mxu0 0.0
    %1929 = vmatprep.subr.mxu0 0.0
    %1930 = vmatpush1.msra.mxu0 0.0
    %1931 = vmatprep.subr.mxu0 0.0
    %1932 = vmatpush1.msra.mxu0 0.0
    %1933 = vmatprep.subr.mxu0 0.0
    %1934 = vmatpush1.msra.mxu0 0.0
    %1935 = vmatprep.subr.mxu0 0.0
    %1936 = vmatpush1.msra.mxu0 0.0
    %1937 = vmatprep.subr.mxu0 0.0
    %1938 = vmatpush1.msra.mxu0 0.0
    %1939 = vmatprep.subr.mxu0 0.0
    %1940 = vmatpush1.msra.mxu0 0.0
    %1941 = vmatprep.subr.mxu0 0.0
    %1942 = vmatpush1.msra.mxu0 0.0
    %1943 = vmatprep.subr.mxu0 0.0
    %1944 = vmatpush1.msra.mxu0 0.0
    %1945 = vmatprep.subr.mxu0 0.0
    %1946 = vmatpush1.msra.mxu0 0.0
    %1947 = vmatprep.subr.mxu0 0.0
    %1948 = vmatpush1.msra.mxu0 0.0
    %1949 = vmatprep.subr.mxu0 0.0
    %1950 = vmatpush1.msra.mxu0 0.0
    %1951 = vmatprep.subr.mxu0 0.0
    %1952 = vmatpush1.msra.mxu0 0.0
    %1953 = vmatprep.subr.mxu0 0.0
    %1954 = vmatpush1.msra.mxu0 0.0
    %1955 = vmatprep.subr.mxu0 0.0
    %1956 = vmatpush1.msra.mxu0 0.0
    %1957 = vmatprep.subr.mxu0 0.0
    %1958 = vmatpush1.msra.mxu0 0.0
    %1959 = vmatprep.subr.mxu0 0.0
    %1960 = vmatpush1.msra.mxu0 0.0
    %1961 = vmatprep.subr.mxu0 0.0
    %1962 = vmatpush1.msra.mxu0 0.0
    %1963 = vmatprep.subr.mxu0 0.0
    %1964 = vmatpush1.msra.mxu0 0.0
    %1965 = vmatprep.subr.mxu0 0.0
    %1966 = vmatpush1.msra.mxu0 0.0
    %1967 = vmatprep.subr.mxu0 0.0
    %1968 = vmatpush1.msra.mxu0 0.0
    %1969 = vmatprep.mubr.f32.mxu0 0.0
    %1970 = vmatmul.mubr.f32.gmra.mrb[0].mxu0 %v1903
    %v1971 = vpop.f32.mrb[0].mxu0
    %v1972 = vadd.f32 %v1896, %v1971
    %v1973 = vpop.f32.mrb[0].mxu0
    %1974 = vdwg.mxu0
    %vm1975 = vcmask 9216
    %1976 = vst.msk [vmem:[#allocation2] sm:$0x3] %vm1975, %v1972
    // Predicated region
    $region74: #{_lambda_.1} parent=1 // pred_check
      _
    $region75: #{_lambda_.1} parent=1 // pred_check_branch
      %1978 = sbr.rel (0) target = $region77
    $region76: #{_lambda_.1} parent=1 // pred_region
      %s1980 = ssub.s32 32, 32
      %1981 = vsyncadd [#allocation3], %s1980
      %s1983 = sshll.u32 [#allocation2], 4
      %s1984 = int_to_ptr.vmem [resolvable:$true] %s1983
      %1986 = dma.vmem_to_hbm [thread:$0]  %s1984, 32, %s18, [#allocation3]
    $region77: #{_lambda_.1} parent=1 // pred_fallthru
      _
    // Predicated region
    $region78: #{_lambda_.1} parent=1 // pred_check
      _
    $region79: #{_lambda_.1} parent=1 // pred_check_branch
      %1988 = sbr.rel (0) target = $region81
    $region80: #{_lambda_.1} parent=1 // pred_region
      %1989 = dma.done [#allocation3], 32
    $region81: #{_lambda_.1} parent=1 // pred_fallthru
      _
    %1990 = vsyncpa [#allocation3], 1

</llo_original>
